<compile_context>
chip_gen: v6e
topology: v6e:2x2x1
jax: 0.10.0
libtpu: 0.0.40
codegen_flags: <defaults>
</compile_context>

<pallas_src>
import jax
import jax.numpy as jnp
from jax.experimental import pallas as pl
from jax.experimental.pallas import tpu as pltpu


def _round_up(x, m):
    return ((x + m - 1) // m) * m


def _apply_act(h, act):
    if act == "relu":
        return jnp.maximum(h, 0.0)
    if act == "tanh":
        return jnp.tanh(h)
    if act == "sigmoid":
        return jax.nn.sigmoid(h)
    if act == "softplus":
        return jax.nn.softplus(h)
    if act == "elu":
        return jax.nn.elu(h)
    return h  # 'linear'


def _chip_params():
    """Per-chip tuning constants (queried at trace time, safe fallbacks)."""
    vmem_cap = 64 << 20  # conservative default = v7x per-core VMEM
    try:
        vmem_cap = int(pltpu.get_tpu_info().vmem_capacity_bytes)
    except Exception:
        pass
    kind = ""
    try:
        kind = jax.devices()[0].device_kind.lower()
    except Exception:
        pass
    newer = ("v6" in kind) or ("v7" in kind)
    m_target = 256 if newer else 128      # MXU rows: 2x256^2 on v6e/v7x, 4x128^2 on v5e
    min_steps = 4 if "v7" in kind else 2  # v7x: 2 TCs x 2 pipelined steps each
    return vmem_cap, m_target, min_steps


# ----------------------------------------------------------------------------
# Kernel
# ----------------------------------------------------------------------------
def _make_mlp_kernel(n_layers, acts, dims_pad, TL, B, n_out, shared_x):
    """refs = (x, [w_i, b_i, mask_i] * n_layers, out).

    Weights/masks are bf16 (masks hold exact 0/1); x / bias / output are f32.
    Matmuls run on the MXU with f32 accumulation; epilogue stays in f32.
    """

    def kernel(*refs):
        x_ref = refs[0]
        out_ref = refs[-1]

        def layer_refs(i):
            w = refs[1 + 3 * i][...]      # (Din_p, Dout_p) bf16
            b = refs[2 + 3 * i][...]      # (1, Dout_p)     f32
            m = refs[3 + 3 * i][...]      # (TL, 1, Dout_p) bf16 (0/1)
            return w, b, m

        def finish(h3, i):
            # h3: (TL, B, dims_pad[i+1]) f32 after bias+mask+act of layer i.
            if i == n_layers - 1:
                # Unpadded narrow store (masked lanes) -> tiny HBM writeback.
                out_ref[...] = h3[:, :, :n_out].astype(out_ref.dtype)
                return None
            # Reshape while still f32 (layout-free view for B % 8 == 0), then a
            # single cast keeps the live inter-layer activation in bf16.
            return h3.reshape(TL * B, dims_pad[i + 1]).astype(jnp.bfloat16)

        if shared_x:
            # x is shared across all L draws: compute layer 0 once for the B
            # rows, then expand to this step's TL draws via the per-draw masks.
            w, b, m = layer_refs(0)
            a = jnp.dot(x_ref[...].astype(jnp.bfloat16), w,
                        preferred_element_type=jnp.float32)          # (B, D1p)
            a = a + b
            h3 = m * a[None, :, :]                                   # (TL, B, D1p) f32
            h3 = _apply_act(h3, acts[0])
            h = finish(h3, 0)
            start = 1
        else:
            h = x_ref[...].reshape(TL * B, dims_pad[0]).astype(jnp.bfloat16)
            start = 0

        for i in range(start, n_layers):
            w, b, m = layer_refs(i)
            acc = jnp.dot(h, w, preferred_element_type=jnp.float32)  # (TL*B, Dout_p)
            acc = acc + b
            h3 = m * acc.reshape(TL, B, dims_pad[i + 1])
            h3 = _apply_act(h3, acts[i])
            h = finish(h3, i)

    return kernel


# ----------------------------------------------------------------------------
# Wrapper
# ----------------------------------------------------------------------------
class DropoutBNN:
    def __init__(self, n_in, n_out, n_hid_layers=2, act="relu",
                 dropout_rate=0.0, n_hidden=100, bias=True, seed=0):
        assert bias, "only bias=True path implemented (module default)"
        self.layers_dim = [n_in] + n_hid_layers * [n_hidden] + [n_out]
        self.dims_pad = [_round_up(d, 128) for d in self.layers_dim]
        self.dropout_rate = float(dropout_rate)
        self.acts = [act if i < n_hid_layers else "linear"
                     for i in range(n_hid_layers + 1)]
        # TODO(synk): layer_norm=True branch (nn.LayerNorm) not implemented; module default is Identity.

        key = jax.random.PRNGKey(seed)
        self.weights, self.biases = [], []            # f32, unpadded (reference)
        self.weights_pad, self.biases_pad = [], []    # padded bf16 / f32 (kernel)
        gain = 1.0
        for i, (din, dout) in enumerate(zip(self.layers_dim[:-1],
                                            self.layers_dim[1:])):
            key, kw, kb = jax.random.split(key, 3)
            bound_w = gain * (6.0 / (din + dout)) ** 0.5        # xavier_uniform_
            w = jax.random.uniform(kw, (din, dout), jnp.float32, -bound_w, bound_w)
            bound_b = 1.0 / (din ** 0.5)                        # U(-1/sqrt(fan_in), .)
            b = jax.random.uniform(kb, (dout,), jnp.float32, -bound_b, bound_b)
            self.weights.append(w)
            self.biases.append(b)
            dinp, doutp = self.dims_pad[i], self.dims_pad[i + 1]
            self.weights_pad.append(
                jnp.pad(w, ((0, dinp - din), (0, doutp - dout))).astype(jnp.bfloat16))
            self.biases_pad.append(jnp.pad(b, (0, doutp - dout)).reshape(1, doutp))

    def draw_noise(self, key, L=1):
        # Raw Bernoulli(1-p) draws, no inverted-dropout scaling — matches the
        # PyTorch DropoutBNN.draw_noise exactly.
        masks = []
        p_keep = 1.0 - self.dropout_rate
        for h in self.layers_dim[1:-1]:
            key, k = jax.random.split(key)
            masks.append(jax.random.bernoulli(k, p_keep, (L, 1, h)).astype(jnp.float32))
        masks.append(jnp.ones((L, 1, self.layers_dim[-1]), jnp.float32))
        return masks

    def _pallas_forward(self, x, masks, L):
        shared_x = (x.ndim == 2)
        n_layers = len(self.weights)
        dims_p = self.dims_pad
        n_in, n_out = self.layers_dim[0], self.layers_dim[-1]
        D0p = dims_p[0]
        B = x.shape[0] if shared_x else x.shape[1]

        vmem_cap, m_target, min_steps = _chip_params()

        # Draws per grid step: fill the MXU M-dim up to the chip target while
        # keeping the grid deep enough (>= min_steps) to pipeline DMAs.
        tl_fill = max(1, -(-m_target // B))
        tl_depth = max(1, L // min_steps) if L >= min_steps else L
        TL = max(1, min(L, tl_fill, tl_depth))
        L_pad = -(-L // TL) * TL
        grid = (L_pad // TL,)

        x = jnp.asarray(x, jnp.float32)
        if shared_x:
            x_pad = jnp.pad(x, ((0, 0), (0, D0p - n_in)))
            spec_defs = [((B, D0p), (lambda l: (0, 0)), True)]
        else:
            x_pad = jnp.pad(x, ((0, L_pad - L), (0, 0), (0, D0p - n_in)))
            spec_defs = [((TL, B, D0p), (lambda l: (l, 0, 0)), False)]
        args = [x_pad]

        for i in range(n_layers):
            dinp, doutp = dims_p[i], dims_p[i + 1]
            dout = self.layers_dim[i + 1]
            m = jnp.asarray(masks[i], jnp.float32)
            m_pad = jnp.pad(m, ((0, L_pad - L), (0, 0), (0, doutp - dout)))
            args += [self.weights_pad[i], self.biases_pad[i],
                     m_pad.astype(jnp.bfloat16)]
            spec_defs += [((dinp, doutp), (lambda l: (0, 0)), True),        # weight (const)
                          ((1, doutp), (lambda l: (0, 0)), True),           # bias   (const)
                          ((TL, 1, doutp), (lambda l: (l, 0, 0)), False)]   # mask   (streamed)

        out_block = (TL, B, n_out)
        out_index = lambda l: (l, 0, 0)
        out_shape = jax.ShapeDtypeStruct((L_pad, B, n_out), jnp.float32)

        kernel = _make_mlp_kernel(n_layers, self.acts, dims_p, TL, B, n_out, shared_x)

        # Advisory cost estimate for XLA's scheduler.
        flops_step = 2 * (B if shared_x else TL * B) * dims_p[0] * dims_p[1]
        for i in range(1, n_layers):
            flops_step += 2 * TL * B * dims_p[i] * dims_p[i + 1]
        bytes_acc = int(sum(int(a.size) * a.dtype.itemsize for a in args)
                        + L_pad * B * n_out * 4)
        cost = pl.CostEstimate(flops=int(flops_step * grid[0]),
                               transcendentals=0, bytes_accessed=bytes_acc)

        def _blk_bytes(shape, itemsize):
            n = 1
            for d in shape:
                n *= int(d)
            return n * itemsize

        def run(single_buffer_consts):
            in_specs = []
            for shape, idx, const in spec_defs:
                if const and single_buffer_consts:
                    # Fetched once, never revisited -> no need to double-buffer.
                    in_specs.append(pl.BlockSpec(shape, idx,
                                                 pipeline_mode=pl.Buffered(buffer_count=1)))
                else:
                    in_specs.append(pl.BlockSpec(shape, idx))
            out_spec = pl.BlockSpec(out_block, out_index)

            # VMEM budget: constants (x1 or x2) + double-buffered streaming blocks
            # + live f32 activation headroom, clamped below physical VMEM.
            const_b = stream_b = 0
            for a, (shape, _, const) in zip(args, spec_defs):
                bb = _blk_bytes(shape, a.dtype.itemsize)
                if const:
                    const_b += bb
                else:
                    stream_b += bb
            out_b = _blk_bytes(out_block, 4)
            work_b = 3 * TL * B * max(dims_p) * 4 + (4 << 20)
            c_mult = 1 if single_buffer_consts else 2
            need = c_mult * const_b + 2 * (stream_b + out_b) + work_b
            vmem_limit = int(min(max(need, 16 << 20), (vmem_cap * 3) // 4))

            fn = pl.pallas_call(
                kernel,
                grid=grid,
                in_specs=in_specs,
                out_specs=out_spec,
                out_shape=out_shape,
                compiler_params=pltpu.CompilerParams(
                    dimension_semantics=("parallel",),
                    vmem_limit_bytes=vmem_limit),
                cost_estimate=cost,
            )
            return fn(*args)

        try:
            out = run(True)
        except Exception:
            # Fallback if pipeline_mode=pl.Buffered(1) is unsupported by the
            # running JAX/Mosaic version: default (double) buffering.
            out = run(False)
        return out[:L]

    def forward(self, x, L=1, noise_key=None):
        if noise_key is None:
            noise_key = jax.random.PRNGKey(1)
        x = jnp.asarray(x, jnp.float32)
        x2d = x.ndim == 2
        if not x2d:
            assert x.shape[0] == L
        masks = self.draw_noise(noise_key, L)
        out = self._pallas_forward(x, masks, L)
        if x2d and L == 1:
            out = out[0]
        return out, masks

    # pure-JAX reference (matches the kernel's bf16-operand / f32-accum matmuls
    # and f32 epilogue exactly)
    def forward_ref(self, x, masks, L=1):
        x2d = x.ndim == 2
        h = jnp.broadcast_to(x, (L,) + x.shape) if x2d else x
        h = jnp.asarray(h, jnp.float32)
        for w, b, m, act in zip(self.weights, self.biases, masks, self.acts):
            a = jnp.dot(h.astype(jnp.bfloat16), w.astype(jnp.bfloat16),
                        preferred_element_type=jnp.float32)
            h = _apply_act(m * (a + b), act)
        if x2d and L == 1:
            h = h[0]
        return h


# ----------------------------------------------------------------------------
if __name__ == "__main__":
    n_in, n_out, n_hid_layers, n_hidden = 8, 4, 2, 32
    B, L = 8, 128   # v6e/v7x: TL=32 -> M=256, grid=4; v5e: TL=16 -> M=128, grid=8

    model = DropoutBNN(n_in, n_out, n_hid_layers=n_hid_layers, act="relu",
                       dropout_rate=0.2, n_hidden=n_hidden, seed=0)

    key = jax.random.PRNGKey(0)
    x2d = jax.random.normal(key, (B, n_in), jnp.float32)

    # 2-D input (shared across draws; no L-fold broadcast in HBM).
    out2, masks2 = model.forward(x2d, L=L, noise_key=jax.random.PRNGKey(1))
    out2 = jax.block_until_ready(out2)
    ref2 = model.forward_ref(x2d, masks2, L=L)
    assert out2.shape == (L, B, n_out), out2.shape
    err2 = float(jnp.max(jnp.abs(out2 - ref2)))
    assert err2 < 2e-3, err2

    # 3-D input (one activation slab per draw).
    key, kx = jax.random.split(key)
    x3d = jax.random.normal(kx, (L, B, n_in), jnp.float32)
    out3, masks3 = model.forward(x3d, L=L, noise_key=jax.random.PRNGKey(2))
    out3 = jax.block_until_ready(out3)
    ref3 = model.forward_ref(x3d, masks3, L=L)
    assert out3.shape == (L, B, n_out), out3.shape
    err3 = float(jnp.max(jnp.abs(out3 - ref3)))
    assert err3 < 2e-3, err3

    print("KERNEL_OK")
</pallas_src>

<mosaic_0001>
module attributes {stable_mosaic.version = 11 : i64} {
  func.func @kernel(%arg0: i32, %arg1: memref<8x128xf32, #tpu.memory_space<vmem>>, %arg2: memref<128x128xbf16, #tpu.memory_space<vmem>>, %arg3: memref<1x128xf32, #tpu.memory_space<vmem>>, %arg4: memref<16x1x128xbf16, #tpu.memory_space<vmem>>, %arg5: memref<128x128xbf16, #tpu.memory_space<vmem>>, %arg6: memref<1x128xf32, #tpu.memory_space<vmem>>, %arg7: memref<16x1x128xbf16, #tpu.memory_space<vmem>>, %arg8: memref<128x128xbf16, #tpu.memory_space<vmem>>, %arg9: memref<1x128xf32, #tpu.memory_space<vmem>>, %arg10: memref<16x1x128xbf16, #tpu.memory_space<vmem>>, %arg11: memref<16x8x4xf32, #tpu.memory_space<vmem>>) attributes {dimension_semantics = [#tpu.dimension_semantics<parallel>], iteration_bounds = array<i64: 8>, scalar_prefetch = 0 : i64, scratch_operands = 0 : i64, tpu.core_type = #tpu.core_type<tc>, window_params = [{pipeline_mode = #tpu.pipeline_mode<synchronous>, transform_indices = @transform_0, window_bounds = array<i64: 8, 128>}, {pipeline_mode = #tpu.pipeline_mode<synchronous>, transform_indices = @transform_1, window_bounds = array<i64: 128, 128>}, {pipeline_mode = #tpu.pipeline_mode<synchronous>, transform_indices = @transform_2, window_bounds = array<i64: 1, 128>}, {transform_indices = @transform_3, window_bounds = array<i64: 16, 1, 128>}, {pipeline_mode = #tpu.pipeline_mode<synchronous>, transform_indices = @transform_4, window_bounds = array<i64: 128, 128>}, {pipeline_mode = #tpu.pipeline_mode<synchronous>, transform_indices = @transform_5, window_bounds = array<i64: 1, 128>}, {transform_indices = @transform_6, window_bounds = array<i64: 16, 1, 128>}, {pipeline_mode = #tpu.pipeline_mode<synchronous>, transform_indices = @transform_7, window_bounds = array<i64: 128, 128>}, {pipeline_mode = #tpu.pipeline_mode<synchronous>, transform_indices = @transform_8, window_bounds = array<i64: 1, 128>}, {transform_indices = @transform_9, window_bounds = array<i64: 16, 1, 128>}, {transform_indices = @transform_10, window_bounds = array<i64: 16, 8, 4>}]} {
    %c0 = arith.constant 0 : index
    %c0_0 = arith.constant 0 : index
    %0 = vector.load %arg2[%c0, %c0_0] : memref<128x128xbf16, #tpu.memory_space<vmem>>, vector<128x128xbf16>
    %c0_1 = arith.constant 0 : index
    %c0_2 = arith.constant 0 : index
    %1 = vector.load %arg3[%c0_1, %c0_2] : memref<1x128xf32, #tpu.memory_space<vmem>>, vector<1x128xf32>
    %c0_3 = arith.constant 0 : index
    %c0_4 = arith.constant 0 : index
    %c0_5 = arith.constant 0 : index
    %2 = vector.load %arg4[%c0_3, %c0_4, %c0_5] : memref<16x1x128xbf16, #tpu.memory_space<vmem>>, vector<16x1x128xbf16>
    %c0_6 = arith.constant 0 : index
    %c0_7 = arith.constant 0 : index
    %3 = vector.load %arg1[%c0_6, %c0_7] : memref<8x128xf32, #tpu.memory_space<vmem>>, vector<8x128xf32>
    %4 = arith.truncf %3 : vector<8x128xf32> to vector<8x128xbf16>
    %cst = arith.constant dense<0.000000e+00> : vector<8x128xf32>
    %5 = tpu.matmul %4, %0, %cst {dimension_numbers = #tpu.dot_dimension_numbers<[1], [0], [0], [1], [0, 0, 1, 1], [], []>} : vector<8x128xbf16>, vector<128x128xbf16>, vector<8x128xf32> -> vector<8x128xf32>
    %6 = vector.broadcast %1 : vector<1x128xf32> to vector<8x128xf32>
    %7 = arith.addf %5, %6 : vector<8x128xf32>
    %8 = vector.shape_cast %7 : vector<8x128xf32> to vector<1x8x128xf32>
    %9 = arith.extf %2 : vector<16x1x128xbf16> to vector<16x1x128xf32>
    %10 = vector.broadcast %9 : vector<16x1x128xf32> to vector<16x8x128xf32>
    %11 = vector.broadcast %8 : vector<1x8x128xf32> to vector<16x8x128xf32>
    %12 = arith.mulf %10, %11 : vector<16x8x128xf32>
    %cst_8 = arith.constant 0.000000e+00 : f32
    %13 = vector.broadcast %cst_8 : f32 to vector<16x8x128xf32>
    %14 = arith.maximumf %12, %13 : vector<16x8x128xf32>
    %15 = vector.shape_cast %14 : vector<16x8x128xf32> to vector<128x128xf32>
    %16 = arith.truncf %15 : vector<128x128xf32> to vector<128x128xbf16>
    %c0_9 = arith.constant 0 : index
    %c0_10 = arith.constant 0 : index
    %17 = vector.load %arg5[%c0_9, %c0_10] : memref<128x128xbf16, #tpu.memory_space<vmem>>, vector<128x128xbf16>
    %c0_11 = arith.constant 0 : index
    %c0_12 = arith.constant 0 : index
    %18 = vector.load %arg6[%c0_11, %c0_12] : memref<1x128xf32, #tpu.memory_space<vmem>>, vector<1x128xf32>
    %c0_13 = arith.constant 0 : index
    %c0_14 = arith.constant 0 : index
    %c0_15 = arith.constant 0 : index
    %19 = vector.load %arg7[%c0_13, %c0_14, %c0_15] : memref<16x1x128xbf16, #tpu.memory_space<vmem>>, vector<16x1x128xbf16>
    %cst_16 = arith.constant dense<0.000000e+00> : vector<128x128xf32>
    %20 = tpu.matmul %16, %17, %cst_16 {dimension_numbers = #tpu.dot_dimension_numbers<[1], [0], [0], [1], [0, 0, 1, 1], [], []>} : vector<128x128xbf16>, vector<128x128xbf16>, vector<128x128xf32> -> vector<128x128xf32>
    %21 = vector.broadcast %18 : vector<1x128xf32> to vector<128x128xf32>
    %22 = arith.addf %20, %21 : vector<128x128xf32>
    %23 = vector.shape_cast %22 : vector<128x128xf32> to vector<16x8x128xf32>
    %24 = arith.extf %19 : vector<16x1x128xbf16> to vector<16x1x128xf32>
    %25 = vector.broadcast %24 : vector<16x1x128xf32> to vector<16x8x128xf32>
    %26 = arith.mulf %25, %23 : vector<16x8x128xf32>
    %cst_17 = arith.constant 0.000000e+00 : f32
    %27 = vector.broadcast %cst_17 : f32 to vector<16x8x128xf32>
    %28 = arith.maximumf %26, %27 : vector<16x8x128xf32>
    %29 = vector.shape_cast %28 : vector<16x8x128xf32> to vector<128x128xf32>
    %30 = arith.truncf %29 : vector<128x128xf32> to vector<128x128xbf16>
    %c0_18 = arith.constant 0 : index
    %c0_19 = arith.constant 0 : index
    %31 = vector.load %arg8[%c0_18, %c0_19] : memref<128x128xbf16, #tpu.memory_space<vmem>>, vector<128x128xbf16>
    %c0_20 = arith.constant 0 : index
    %c0_21 = arith.constant 0 : index
    %32 = vector.load %arg9[%c0_20, %c0_21] : memref<1x128xf32, #tpu.memory_space<vmem>>, vector<1x128xf32>
    %c0_22 = arith.constant 0 : index
    %c0_23 = arith.constant 0 : index
    %c0_24 = arith.constant 0 : index
    %33 = vector.load %arg10[%c0_22, %c0_23, %c0_24] : memref<16x1x128xbf16, #tpu.memory_space<vmem>>, vector<16x1x128xbf16>
    %cst_25 = arith.constant dense<0.000000e+00> : vector<128x128xf32>
    %34 = tpu.matmul %30, %31, %cst_25 {dimension_numbers = #tpu.dot_dimension_numbers<[1], [0], [0], [1], [0, 0, 1, 1], [], []>} : vector<128x128xbf16>, vector<128x128xbf16>, vector<128x128xf32> -> vector<128x128xf32>
    %35 = vector.broadcast %32 : vector<1x128xf32> to vector<128x128xf32>
    %36 = arith.addf %34, %35 : vector<128x128xf32>
    %37 = vector.shape_cast %36 : vector<128x128xf32> to vector<16x8x128xf32>
    %38 = arith.extf %33 : vector<16x1x128xbf16> to vector<16x1x128xf32>
    %39 = vector.broadcast %38 : vector<16x1x128xf32> to vector<16x8x128xf32>
    %40 = arith.mulf %39, %37 : vector<16x8x128xf32>
    %41 = vector.extract_strided_slice %40 {offsets = [0, 0, 0], sizes = [16, 8, 4], strides = [1, 1, 1]} : vector<16x8x128xf32> to vector<16x8x4xf32>
    %c0_26 = arith.constant 0 : index
    %c0_27 = arith.constant 0 : index
    %c0_28 = arith.constant 0 : index
    %42 = vector.load %arg11[%c0_26, %c0_27, %c0_28] : memref<16x8x4xf32, #tpu.memory_space<vmem>>, vector<16x8x4xf32>
    tpu.vector_store %arg11[%c0_26, %c0_27, %c0_28], %41 {strides = array<i32>} : memref<16x8x4xf32, #tpu.memory_space<vmem>>, vector<16x8x4xf32>,
    return
  }
  func.func @transform_0(%arg0: i32) -> (i32, i32) {
    %c0_i32 = arith.constant 0 : i32
    %c0_i32_0 = arith.constant 0 : i32
    %c0_i32_1 = arith.constant 0 : i32
    return %c0_i32, %c0_i32_0 : i32, i32
  }
  func.func @transform_1(%arg0: i32) -> (i32, i32) {
    %c0_i32 = arith.constant 0 : i32
    %c0_i32_0 = arith.constant 0 : i32
    %c0_i32_1 = arith.constant 0 : i32
    return %c0_i32, %c0_i32_0 : i32, i32
  }
  func.func @transform_2(%arg0: i32) -> (i32, i32) {
    %c0_i32 = arith.constant 0 : i32
    %c0_i32_0 = arith.constant 0 : i32
    %c0_i32_1 = arith.constant 0 : i32
    return %c0_i32, %c0_i32_0 : i32, i32
  }
  func.func @transform_3(%arg0: i32) -> (i32, i32, i32) {
    %c0_i32 = arith.constant 0 : i32
    %c0_i32_0 = arith.constant 0 : i32
    %c0_i32_1 = arith.constant 0 : i32
    return %arg0, %c0_i32, %c0_i32_0 : i32, i32, i32
  }
  func.func @transform_4(%arg0: i32) -> (i32, i32) {
    %c0_i32 = arith.constant 0 : i32
    %c0_i32_0 = arith.constant 0 : i32
    %c0_i32_1 = arith.constant 0 : i32
    return %c0_i32, %c0_i32_0 : i32, i32
  }
  func.func @transform_5(%arg0: i32) -> (i32, i32) {
    %c0_i32 = arith.constant 0 : i32
    %c0_i32_0 = arith.constant 0 : i32
    %c0_i32_1 = arith.constant 0 : i32
    return %c0_i32, %c0_i32_0 : i32, i32
  }
  func.func @transform_6(%arg0: i32) -> (i32, i32, i32) {
    %c0_i32 = arith.constant 0 : i32
    %c0_i32_0 = arith.constant 0 : i32
    %c0_i32_1 = arith.constant 0 : i32
    return %arg0, %c0_i32, %c0_i32_0 : i32, i32, i32
  }
  func.func @transform_7(%arg0: i32) -> (i32, i32) {
    %c0_i32 = arith.constant 0 : i32
    %c0_i32_0 = arith.constant 0 : i32
    %c0_i32_1 = arith.constant 0 : i32
    return %c0_i32, %c0_i32_0 : i32, i32
  }
  func.func @transform_8(%arg0: i32) -> (i32, i32) {
    %c0_i32 = arith.constant 0 : i32
    %c0_i32_0 = arith.constant 0 : i32
    %c0_i32_1 = arith.constant 0 : i32
    return %c0_i32, %c0_i32_0 : i32, i32
  }
  func.func @transform_9(%arg0: i32) -> (i32, i32, i32) {
    %c0_i32 = arith.constant 0 : i32
    %c0_i32_0 = arith.constant 0 : i32
    %c0_i32_1 = arith.constant 0 : i32
    return %arg0, %c0_i32, %c0_i32_0 : i32, i32, i32
  }
  func.func @transform_10(%arg0: i32) -> (i32, i32, i32) {
    %c0_i32 = arith.constant 0 : i32
    %c0_i32_0 = arith.constant 0 : i32
    %c0_i32_1 = arith.constant 0 : i32
    return %arg0, %c0_i32, %c0_i32_0 : i32, i32, i32
  }
}

module attributes {stable_mosaic.version = 11 : i64} {
  func.func @kernel(%arg0: i32, %arg1: memref<8x128xf32, #tpu.memory_space<vmem>>, %arg2: memref<128x128xbf16, #tpu.memory_space<vmem>>, %arg3: memref<1x128xf32, #tpu.memory_space<vmem>>, %arg4: memref<16x1x128xbf16, #tpu.memory_space<vmem>>, %arg5: memref<128x128xbf16, #tpu.memory_space<vmem>>, %arg6: memref<1x128xf32, #tpu.memory_space<vmem>>, %arg7: memref<16x1x128xbf16, #tpu.memory_space<vmem>>, %arg8: memref<128x128xbf16, #tpu.memory_space<vmem>>, %arg9: memref<1x128xf32, #tpu.memory_space<vmem>>, %arg10: memref<16x1x128xbf16, #tpu.memory_space<vmem>>, %arg11: memref<16x8x4xf32, #tpu.memory_space<vmem>>) attributes {dimension_semantics = [#tpu.dimension_semantics<parallel>], iteration_bounds = array<i64: 8>, scalar_prefetch = 0 : i64, scratch_operands = 0 : i64, tpu.core_type = #tpu.core_type<tc>, window_params = [{pipeline_mode = #tpu.pipeline_mode<synchronous>, transform_indices = @transform_0, window_bounds = array<i64: 8, 128>}, {pipeline_mode = #tpu.pipeline_mode<synchronous>, transform_indices = @transform_1, window_bounds = array<i64: 128, 128>}, {pipeline_mode = #tpu.pipeline_mode<synchronous>, transform_indices = @transform_2, window_bounds = array<i64: 1, 128>}, {transform_indices = @transform_3, window_bounds = array<i64: 16, 1, 128>}, {pipeline_mode = #tpu.pipeline_mode<synchronous>, transform_indices = @transform_4, window_bounds = array<i64: 128, 128>}, {pipeline_mode = #tpu.pipeline_mode<synchronous>, transform_indices = @transform_5, window_bounds = array<i64: 1, 128>}, {transform_indices = @transform_6, window_bounds = array<i64: 16, 1, 128>}, {pipeline_mode = #tpu.pipeline_mode<synchronous>, transform_indices = @transform_7, window_bounds = array<i64: 128, 128>}, {pipeline_mode = #tpu.pipeline_mode<synchronous>, transform_indices = @transform_8, window_bounds = array<i64: 1, 128>}, {transform_indices = @transform_9, window_bounds = array<i64: 16, 1, 128>}, {transform_indices = @transform_10, window_bounds = array<i64: 16, 8, 4>}]} {
    %c0 = arith.constant 0 : index
    %c0_0 = arith.constant 0 : index
    %0 = vector.load %arg2[%c0, %c0_0] : memref<128x128xbf16, #tpu.memory_space<vmem>>, vector<128x128xbf16>
    %c0_1 = arith.constant 0 : index
    %c0_2 = arith.constant 0 : index
    %1 = vector.load %arg3[%c0_1, %c0_2] : memref<1x128xf32, #tpu.memory_space<vmem>>, vector<1x128xf32>
    %c0_3 = arith.constant 0 : index
    %c0_4 = arith.constant 0 : index
    %c0_5 = arith.constant 0 : index
    %2 = vector.load %arg4[%c0_3, %c0_4, %c0_5] : memref<16x1x128xbf16, #tpu.memory_space<vmem>>, vector<16x1x128xbf16>
    %c0_6 = arith.constant 0 : index
    %c0_7 = arith.constant 0 : index
    %3 = vector.load %arg1[%c0_6, %c0_7] : memref<8x128xf32, #tpu.memory_space<vmem>>, vector<8x128xf32>
    %4 = arith.truncf %3 : vector<8x128xf32> to vector<8x128xbf16>
    %cst = arith.constant dense<0.000000e+00> : vector<8x128xf32>
    %5 = tpu.matmul %4, %0, %cst {dimension_numbers = #tpu.dot_dimension_numbers<[1], [0], [0], [1], [0, 0, 1, 1], [], []>} : vector<8x128xbf16>, vector<128x128xbf16>, vector<8x128xf32> -> vector<8x128xf32>
    %6 = vector.broadcast %1 : vector<1x128xf32> to vector<8x128xf32>
    %7 = arith.addf %5, %6 : vector<8x128xf32>
    %8 = vector.shape_cast %7 : vector<8x128xf32> to vector<1x8x128xf32>
    %9 = arith.extf %2 : vector<16x1x128xbf16> to vector<16x1x128xf32>
    %10 = vector.broadcast %9 : vector<16x1x128xf32> to vector<16x8x128xf32>
    %11 = vector.broadcast %8 : vector<1x8x128xf32> to vector<16x8x128xf32>
    %12 = arith.mulf %10, %11 : vector<16x8x128xf32>
    %cst_8 = arith.constant 0.000000e+00 : f32
    %13 = vector.broadcast %cst_8 : f32 to vector<16x8x128xf32>
    %14 = arith.maximumf %12, %13 : vector<16x8x128xf32>
    %15 = vector.shape_cast %14 : vector<16x8x128xf32> to vector<128x128xf32>
    %16 = arith.truncf %15 : vector<128x128xf32> to vector<128x128xbf16>
    %c0_9 = arith.constant 0 : index
    %c0_10 = arith.constant 0 : index
    %17 = vector.load %arg5[%c0_9, %c0_10] : memref<128x128xbf16, #tpu.memory_space<vmem>>, vector<128x128xbf16>
    %c0_11 = arith.constant 0 : index
    %c0_12 = arith.constant 0 : index
    %18 = vector.load %arg6[%c0_11, %c0_12] : memref<1x128xf32, #tpu.memory_space<vmem>>, vector<1x128xf32>
    %c0_13 = arith.constant 0 : index
    %c0_14 = arith.constant 0 : index
    %c0_15 = arith.constant 0 : index
    %19 = vector.load %arg7[%c0_13, %c0_14, %c0_15] : memref<16x1x128xbf16, #tpu.memory_space<vmem>>, vector<16x1x128xbf16>
    %cst_16 = arith.constant dense<0.000000e+00> : vector<128x128xf32>
    %20 = tpu.matmul %16, %17, %cst_16 {dimension_numbers = #tpu.dot_dimension_numbers<[1], [0], [0], [1], [0, 0, 1, 1], [], []>} : vector<128x128xbf16>, vector<128x128xbf16>, vector<128x128xf32> -> vector<128x128xf32>
    %21 = vector.broadcast %18 : vector<1x128xf32> to vector<128x128xf32>
    %22 = arith.addf %20, %21 : vector<128x128xf32>
    %23 = vector.shape_cast %22 : vector<128x128xf32> to vector<16x8x128xf32>
    %24 = arith.extf %19 : vector<16x1x128xbf16> to vector<16x1x128xf32>
    %25 = vector.broadcast %24 : vector<16x1x128xf32> to vector<16x8x128xf32>
    %26 = arith.mulf %25, %23 : vector<16x8x128xf32>
    %cst_17 = arith.constant 0.000000e+00 : f32
    %27 = vector.broadcast %cst_17 : f32 to vector<16x8x128xf32>
    %28 = arith.maximumf %26, %27 : vector<16x8x128xf32>
    %29 = vector.shape_cast %28 : vector<16x8x128xf32> to vector<128x128xf32>
    %30 = arith.truncf %29 : vector<128x128xf32> to vector<128x128xbf16>
    %c0_18 = arith.constant 0 : index
    %c0_19 = arith.constant 0 : index
    %31 = vector.load %arg8[%c0_18, %c0_19] : memref<128x128xbf16, #tpu.memory_space<vmem>>, vector<128x128xbf16>
    %c0_20 = arith.constant 0 : index
    %c0_21 = arith.constant 0 : index
    %32 = vector.load %arg9[%c0_20, %c0_21] : memref<1x128xf32, #tpu.memory_space<vmem>>, vector<1x128xf32>
    %c0_22 = arith.constant 0 : index
    %c0_23 = arith.constant 0 : index
    %c0_24 = arith.constant 0 : index
    %33 = vector.load %arg10[%c0_22, %c0_23, %c0_24] : memref<16x1x128xbf16, #tpu.memory_space<vmem>>, vector<16x1x128xbf16>
    %cst_25 = arith.constant dense<0.000000e+00> : vector<128x128xf32>
    %34 = tpu.matmul %30, %31, %cst_25 {dimension_numbers = #tpu.dot_dimension_numbers<[1], [0], [0], [1], [0, 0, 1, 1], [], []>} : vector<128x128xbf16>, vector<128x128xbf16>, vector<128x128xf32> -> vector<128x128xf32>
    %35 = vector.broadcast %32 : vector<1x128xf32> to vector<128x128xf32>
    %36 = arith.addf %34, %35 : vector<128x128xf32>
    %37 = vector.shape_cast %36 : vector<128x128xf32> to vector<16x8x128xf32>
    %38 = arith.extf %33 : vector<16x1x128xbf16> to vector<16x1x128xf32>
    %39 = vector.broadcast %38 : vector<16x1x128xf32> to vector<16x8x128xf32>
    %40 = arith.mulf %39, %37 : vector<16x8x128xf32>
    %41 = vector.extract_strided_slice %40 {offsets = [0, 0, 0], sizes = [16, 8, 4], strides = [1, 1, 1]} : vector<16x8x128xf32> to vector<16x8x4xf32>
    %c0_26 = arith.constant 0 : index
    %c0_27 = arith.constant 0 : index
    %c0_28 = arith.constant 0 : index
    %42 = vector.load %arg11[%c0_26, %c0_27, %c0_28] : memref<16x8x4xf32, #tpu.memory_space<vmem>>, vector<16x8x4xf32>
    tpu.vector_store %arg11[%c0_26, %c0_27, %c0_28], %41 {strides = array<i32>} : memref<16x8x4xf32, #tpu.memory_space<vmem>>, vector<16x8x4xf32>,
    return
  }
  func.func @transform_0(%arg0: i32) -> (i32, i32) {
    %c0_i32 = arith.constant 0 : i32
    %c0_i32_0 = arith.constant 0 : i32
    %c0_i32_1 = arith.constant 0 : i32
    return %c0_i32, %c0_i32_0 : i32, i32
  }
  func.func @transform_1(%arg0: i32) -> (i32, i32) {
    %c0_i32 = arith.constant 0 : i32
    %c0_i32_0 = arith.constant 0 : i32
    %c0_i32_1 = arith.constant 0 : i32
    return %c0_i32, %c0_i32_0 : i32, i32
  }
  func.func @transform_2(%arg0: i32) -> (i32, i32) {
    %c0_i32 = arith.constant 0 : i32
    %c0_i32_0 = arith.constant 0 : i32
    %c0_i32_1 = arith.constant 0 : i32
    return %c0_i32, %c0_i32_0 : i32, i32
  }
  func.func @transform_3(%arg0: i32) -> (i32, i32, i32) {
    %c0_i32 = arith.constant 0 : i32
    %c0_i32_0 = arith.constant 0 : i32
    %c0_i32_1 = arith.constant 0 : i32
    return %arg0, %c0_i32, %c0_i32_0 : i32, i32, i32
  }
  func.func @transform_4(%arg0: i32) -> (i32, i32) {
    %c0_i32 = arith.constant 0 : i32
    %c0_i32_0 = arith.constant 0 : i32
    %c0_i32_1 = arith.constant 0 : i32
    return %c0_i32, %c0_i32_0 : i32, i32
  }
  func.func @transform_5(%arg0: i32) -> (i32, i32) {
    %c0_i32 = arith.constant 0 : i32
    %c0_i32_0 = arith.constant 0 : i32
    %c0_i32_1 = arith.constant 0 : i32
    return %c0_i32, %c0_i32_0 : i32, i32
  }
  func.func @transform_6(%arg0: i32) -> (i32, i32, i32) {
    %c0_i32 = arith.constant 0 : i32
    %c0_i32_0 = arith.constant 0 : i32
    %c0_i32_1 = arith.constant 0 : i32
    return %arg0, %c0_i32, %c0_i32_0 : i32, i32, i32
  }
  func.func @transform_7(%arg0: i32) -> (i32, i32) {
    %c0_i32 = arith.constant 0 : i32
    %c0_i32_0 = arith.constant 0 : i32
    %c0_i32_1 = arith.constant 0 : i32
    return %c0_i32, %c0_i32_0 : i32, i32
  }
  func.func @transform_8(%arg0: i32) -> (i32, i32) {
    %c0_i32 = arith.constant 0 : i32
    %c0_i32_0 = arith.constant 0 : i32
    %c0_i32_1 = arith.constant 0 : i32
    return %c0_i32, %c0_i32_0 : i32, i32
  }
  func.func @transform_9(%arg0: i32) -> (i32, i32, i32) {
    %c0_i32 = arith.constant 0 : i32
    %c0_i32_0 = arith.constant 0 : i32
    %c0_i32_1 = arith.constant 0 : i32
    return %arg0, %c0_i32, %c0_i32_0 : i32, i32, i32
  }
  func.func @transform_10(%arg0: i32) -> (i32, i32, i32) {
    %c0_i32 = arith.constant 0 : i32
    %c0_i32_0 = arith.constant 0 : i32
    %c0_i32_1 = arith.constant 0 : i32
    return %arg0, %c0_i32, %c0_i32_0 : i32, i32, i32
  }
}

</mosaic_0001>

<llo_original>
// kernel: tpu_custom_call.1
$region0: #{tpu_custom_call.1}
  #allocation0 [shape = 'u32[]', space=smem, size = 0x4, offset = 0x4, fixed_abs, tag = 'smem constant byte address 0x4 - core index']
  #allocation1 [shape = 'u32[144,128]{1,0:T(1,128)}', space=vmem, size = 0x12000, scoped, tag = 'internal scratch']
  %s0 = inlined_call_operand.vmem [shape: f32[8,128], index: 0, kind: input, shape index: {}]
  %s1 = inlined_call_operand.vmem [shape: bf16[128,128], index: 1, kind: input, shape index: {}]
  %s2 = inlined_call_operand.vmem [shape: f32[1,128], index: 2, kind: input, shape index: {}]
  %s3 = inlined_call_operand.vmem [shape: bf16[128,1,128], index: 3, kind: input, shape index: {}]
  %s4 = inlined_call_operand.vmem [shape: bf16[128,128], index: 4, kind: input, shape index: {}]
  %s5 = inlined_call_operand.vmem [shape: f32[1,128], index: 5, kind: input, shape index: {}]
  %s6 = inlined_call_operand.vmem [shape: bf16[128,1,128], index: 6, kind: input, shape index: {}]
  %s7 = inlined_call_operand.vmem [shape: bf16[128,128], index: 7, kind: input, shape index: {}]
  %s8 = inlined_call_operand.vmem [shape: f32[1,128], index: 8, kind: input, shape index: {}]
  %s9 = inlined_call_operand.vmem [shape: bf16[128,1,128], index: 9, kind: input, shape index: {}]
  %s10 = inlined_call_operand.vmem [shape: f32[128,8,4], index: 10, kind: output, shape index: {}]
  %s11 = sld [smem:[#allocation0]]
  $region73: #{tpu_custom_call.1} parent=0
    _
  %s13 = ssub.s32 1, %s11
  %s14 = scalar_select 0, %s13, %s11
  loop: start=0, step=1, limit=10
  $region2: #{tpu_custom_call.1} parent=0 // loop_pre_header
    _
  $region3: #{tpu_custom_call.1} parent=0 // loop_header
    %s16 = sphi 0, %s20
    %p17 = scmp.ge.s32.totalorder %s16, 10
    %s24 = sphi 0, %s24
    %s26 = sphi 0, %s24
    %s27 = sphi 0, %s26
    %s41 = sphi 0, %s27
    %s45 = sphi 0, %s45
    %s47 = sphi 0, %s45
    %s48 = sphi 0, %s47
    %s62 = sphi 0, %s48
    %s66 = sphi 0, %s66
    %s68 = sphi 0, %s66
    %s69 = sphi 0, %s68
    %s83 = sphi 0, %s69
    %s89 = sphi 0, %s91
    %s92 = sphi 0, %s89
    %s93 = sphi 0, %s92
    %s109 = sphi 0, %s93
    %s113 = sphi 0, %s113
    %s115 = sphi 0, %s113
    %s116 = sphi 0, %s115
    %s130 = sphi 0, %s116
    %s134 = sphi 0, %s134
    %s136 = sphi 0, %s134
    %s137 = sphi 0, %s136
    %s151 = sphi 0, %s137
    %s157 = sphi 0, %s159
    %s160 = sphi 0, %s157
    %s161 = sphi 0, %s160
    %s177 = sphi 0, %s161
    %s181 = sphi 0, %s181
    %s183 = sphi 0, %s181
    %s184 = sphi 0, %s183
    %s198 = sphi 0, %s184
    %s202 = sphi 0, %s202
    %s204 = sphi 0, %s202
    %s205 = sphi 0, %s204
    %s219 = sphi 0, %s205
    %s225 = sphi 0, %s227
    %s228 = sphi 0, %s225
    %s229 = sphi 0, %s228
    %s245 = sphi 0, %s229
    %s251 = sphi 0, %s253
    %s254 = sphi 0, %s251
    %s255 = sphi 0, %s254
    %s271 = sphi 0, %s255
  $region4: #{tpu_custom_call.1} parent=0 // loop_header_branch
    %19 = sbr.rel (%p17) target = $region8
  $region5: #{tpu_custom_call.1} parent=0 // loop_body
    %s21 = ssub.s32 %s16, 1
    %s22 = ssub.s32 %s16, 2
    %s23 = sadd.s32 %s16, 1
    %s25 = sadd.s32 %s24, 1
    %p28 = scmp.eq.s32.totalorder %s16, 7
    %p29 = scmp.ne.s32.totalorder %s24, %s26
    %p30 = scmp.eq.s32.totalorder %s16, 0
    %p31 = por %p29, %p30
    %p32 = scmp.ne.s32.totalorder %s24, %s26
    %p33 = scmp.eq.s32.totalorder %s21, 7
    %p34 = por %p32, %p33
    %p35 = scmp.ne.s32.totalorder %s26, %s27
    %p36 = scmp.eq.s32.totalorder %s21, 0
    %p37 = por %p35, %p36
    %p38 = scmp.ne.s32.totalorder %s26, %s27
    %p39 = scmp.eq.s32.totalorder %s22, 7
    %p40 = por %p38, %p39
    %p42 = scmp.ne.s32.totalorder %s27, %s41
    %p43 = scmp.eq.s32.totalorder %s22, 0
    %p44 = por %p42, %p43
    %s46 = sadd.s32 %s45, 1
    %p49 = scmp.eq.s32.totalorder %s16, 7
    %p50 = scmp.ne.s32.totalorder %s45, %s47
    %p51 = scmp.eq.s32.totalorder %s16, 0
    %p52 = por %p50, %p51
    %p53 = scmp.ne.s32.totalorder %s45, %s47
    %p54 = scmp.eq.s32.totalorder %s21, 7
    %p55 = por %p53, %p54
    %p56 = scmp.ne.s32.totalorder %s47, %s48
    %p57 = scmp.eq.s32.totalorder %s21, 0
    %p58 = por %p56, %p57
    %p59 = scmp.ne.s32.totalorder %s47, %s48
    %p60 = scmp.eq.s32.totalorder %s22, 7
    %p61 = por %p59, %p60
    %p63 = scmp.ne.s32.totalorder %s48, %s62
    %p64 = scmp.eq.s32.totalorder %s22, 0
    %p65 = por %p63, %p64
    %s67 = sadd.s32 %s66, 1
    %p70 = scmp.eq.s32.totalorder %s16, 7
    %p71 = scmp.ne.s32.totalorder %s66, %s68
    %p72 = scmp.eq.s32.totalorder %s16, 0
    %p73 = por %p71, %p72
    %p74 = scmp.ne.s32.totalorder %s66, %s68
    %p75 = scmp.eq.s32.totalorder %s21, 7
    %p76 = por %p74, %p75
    %p77 = scmp.ne.s32.totalorder %s68, %s69
    %p78 = scmp.eq.s32.totalorder %s21, 0
    %p79 = por %p77, %p78
    %p80 = scmp.ne.s32.totalorder %s68, %s69
    %p81 = scmp.eq.s32.totalorder %s22, 7
    %p82 = por %p80, %p81
    %p84 = scmp.ne.s32.totalorder %s69, %s83
    %p85 = scmp.eq.s32.totalorder %s22, 0
    %p86 = por %p84, %p85
    %s87 = ssub.s32 %s16, %s23
    %p88 = scmp.eq.s32.totalorder %s87, 0
    %s90 = sadd.s32 %s89, 1
    %s91 = scalar_select %p88, %s89, %s90
    %p94 = pneg %p88
    %p95 = scmp.eq.s32.totalorder %s16, 7
    %p96 = por %p94, %p95
    %p97 = scmp.ne.s32.totalorder %s89, %s92
    %p98 = scmp.eq.s32.totalorder %s16, 0
    %p99 = por %p97, %p98
    %p100 = scmp.ne.s32.totalorder %s89, %s92
    %p101 = scmp.eq.s32.totalorder %s21, 7
    %p102 = por %p100, %p101
    %p103 = scmp.ne.s32.totalorder %s92, %s93
    %p104 = scmp.eq.s32.totalorder %s21, 0
    %p105 = por %p103, %p104
    %p106 = scmp.ne.s32.totalorder %s92, %s93
    %p107 = scmp.eq.s32.totalorder %s22, 7
    %p108 = por %p106, %p107
    %p110 = scmp.ne.s32.totalorder %s93, %s109
    %p111 = scmp.eq.s32.totalorder %s22, 0
    %p112 = por %p110, %p111
    %s114 = sadd.s32 %s113, 1
    %p117 = scmp.eq.s32.totalorder %s16, 7
    %p118 = scmp.ne.s32.totalorder %s113, %s115
    %p119 = scmp.eq.s32.totalorder %s16, 0
    %p120 = por %p118, %p119
    %p121 = scmp.ne.s32.totalorder %s113, %s115
    %p122 = scmp.eq.s32.totalorder %s21, 7
    %p123 = por %p121, %p122
    %p124 = scmp.ne.s32.totalorder %s115, %s116
    %p125 = scmp.eq.s32.totalorder %s21, 0
    %p126 = por %p124, %p125
    %p127 = scmp.ne.s32.totalorder %s115, %s116
    %p128 = scmp.eq.s32.totalorder %s22, 7
    %p129 = por %p127, %p128
    %p131 = scmp.ne.s32.totalorder %s116, %s130
    %p132 = scmp.eq.s32.totalorder %s22, 0
    %p133 = por %p131, %p132
    %s135 = sadd.s32 %s134, 1
    %p138 = scmp.eq.s32.totalorder %s16, 7
    %p139 = scmp.ne.s32.totalorder %s134, %s136
    %p140 = scmp.eq.s32.totalorder %s16, 0
    %p141 = por %p139, %p140
    %p142 = scmp.ne.s32.totalorder %s134, %s136
    %p143 = scmp.eq.s32.totalorder %s21, 7
    %p144 = por %p142, %p143
    %p145 = scmp.ne.s32.totalorder %s136, %s137
    %p146 = scmp.eq.s32.totalorder %s21, 0
    %p147 = por %p145, %p146
    %p148 = scmp.ne.s32.totalorder %s136, %s137
    %p149 = scmp.eq.s32.totalorder %s22, 7
    %p150 = por %p148, %p149
    %p152 = scmp.ne.s32.totalorder %s137, %s151
    %p153 = scmp.eq.s32.totalorder %s22, 0
    %p154 = por %p152, %p153
    %s155 = ssub.s32 %s16, %s23
    %p156 = scmp.eq.s32.totalorder %s155, 0
    %s158 = sadd.s32 %s157, 1
    %s159 = scalar_select %p156, %s157, %s158
    %p162 = pneg %p156
    %p163 = scmp.eq.s32.totalorder %s16, 7
    %p164 = por %p162, %p163
    %p165 = scmp.ne.s32.totalorder %s157, %s160
    %p166 = scmp.eq.s32.totalorder %s16, 0
    %p167 = por %p165, %p166
    %p168 = scmp.ne.s32.totalorder %s157, %s160
    %p169 = scmp.eq.s32.totalorder %s21, 7
    %p170 = por %p168, %p169
    %p171 = scmp.ne.s32.totalorder %s160, %s161
    %p172 = scmp.eq.s32.totalorder %s21, 0
    %p173 = por %p171, %p172
    %p174 = scmp.ne.s32.totalorder %s160, %s161
    %p175 = scmp.eq.s32.totalorder %s22, 7
    %p176 = por %p174, %p175
    %p178 = scmp.ne.s32.totalorder %s161, %s177
    %p179 = scmp.eq.s32.totalorder %s22, 0
    %p180 = por %p178, %p179
    %s182 = sadd.s32 %s181, 1
    %p185 = scmp.eq.s32.totalorder %s16, 7
    %p186 = scmp.ne.s32.totalorder %s181, %s183
    %p187 = scmp.eq.s32.totalorder %s16, 0
    %p188 = por %p186, %p187
    %p189 = scmp.ne.s32.totalorder %s181, %s183
    %p190 = scmp.eq.s32.totalorder %s21, 7
    %p191 = por %p189, %p190
    %p192 = scmp.ne.s32.totalorder %s183, %s184
    %p193 = scmp.eq.s32.totalorder %s21, 0
    %p194 = por %p192, %p193
    %p195 = scmp.ne.s32.totalorder %s183, %s184
    %p196 = scmp.eq.s32.totalorder %s22, 7
    %p197 = por %p195, %p196
    %p199 = scmp.ne.s32.totalorder %s184, %s198
    %p200 = scmp.eq.s32.totalorder %s22, 0
    %p201 = por %p199, %p200
    %s203 = sadd.s32 %s202, 1
    %p206 = scmp.eq.s32.totalorder %s16, 7
    %p207 = scmp.ne.s32.totalorder %s202, %s204
    %p208 = scmp.eq.s32.totalorder %s16, 0
    %p209 = por %p207, %p208
    %p210 = scmp.ne.s32.totalorder %s202, %s204
    %p211 = scmp.eq.s32.totalorder %s21, 7
    %p212 = por %p210, %p211
    %p213 = scmp.ne.s32.totalorder %s204, %s205
    %p214 = scmp.eq.s32.totalorder %s21, 0
    %p215 = por %p213, %p214
    %p216 = scmp.ne.s32.totalorder %s204, %s205
    %p217 = scmp.eq.s32.totalorder %s22, 7
    %p218 = por %p216, %p217
    %p220 = scmp.ne.s32.totalorder %s205, %s219
    %p221 = scmp.eq.s32.totalorder %s22, 0
    %p222 = por %p220, %p221
    %s223 = ssub.s32 %s16, %s23
    %p224 = scmp.eq.s32.totalorder %s223, 0
    %s226 = sadd.s32 %s225, 1
    %s227 = scalar_select %p224, %s225, %s226
    %p230 = pneg %p224
    %p231 = scmp.eq.s32.totalorder %s16, 7
    %p232 = por %p230, %p231
    %p233 = scmp.ne.s32.totalorder %s225, %s228
    %p234 = scmp.eq.s32.totalorder %s16, 0
    %p235 = por %p233, %p234
    %p236 = scmp.ne.s32.totalorder %s225, %s228
    %p237 = scmp.eq.s32.totalorder %s21, 7
    %p238 = por %p236, %p237
    %p239 = scmp.ne.s32.totalorder %s228, %s229
    %p240 = scmp.eq.s32.totalorder %s21, 0
    %p241 = por %p239, %p240
    %p242 = scmp.ne.s32.totalorder %s228, %s229
    %p243 = scmp.eq.s32.totalorder %s22, 7
    %p244 = por %p242, %p243
    %p246 = scmp.ne.s32.totalorder %s229, %s245
    %p247 = scmp.eq.s32.totalorder %s22, 0
    %p248 = por %p246, %p247
    %s249 = ssub.s32 %s16, %s23
    %p250 = scmp.eq.s32.totalorder %s249, 0
    %s252 = sadd.s32 %s251, 1
    %s253 = scalar_select %p250, %s251, %s252
    %p256 = pneg %p250
    %p257 = scmp.eq.s32.totalorder %s16, 7
    %p258 = por %p256, %p257
    %p259 = scmp.ne.s32.totalorder %s251, %s254
    %p260 = scmp.eq.s32.totalorder %s16, 0
    %p261 = por %p259, %p260
    %p262 = scmp.ne.s32.totalorder %s251, %s254
    %p263 = scmp.eq.s32.totalorder %s21, 7
    %p264 = por %p262, %p263
    %p265 = scmp.ne.s32.totalorder %s254, %s255
    %p266 = scmp.eq.s32.totalorder %s21, 0
    %p267 = por %p265, %p266
    %p268 = scmp.ne.s32.totalorder %s254, %s255
    %p269 = scmp.eq.s32.totalorder %s22, 7
    %p270 = por %p268, %p269
    %p272 = scmp.ne.s32.totalorder %s255, %s271
    %p273 = scmp.eq.s32.totalorder %s22, 0
    %p274 = por %p272, %p273
    %p275 = scmp.le.s32.totalorder 1, %s16
    %p276 = scmp.lt.s32.totalorder %s16, 9
    %p277 = pnand %p275, %p276
    %p278 = pneg %p277
    // Predicated region
    $region9: #{tpu_custom_call.1} parent=5 // pred_check
      _
    $region10: #{tpu_custom_call.1} parent=5 // pred_check_branch
      %280 = sbr.rel (%p277) target = $region12
    $region11: #{tpu_custom_call.1} parent=5 // pred_region
      %s281 = ssub.s32 %s16, 1
      // Predicated region
      $region13: #{tpu_custom_call.1} parent=11 // pred_check
        %p282 = pneg %p37
      $region14: #{tpu_custom_call.1} parent=11 // pred_check_branch
        %284 = sbr.rel (%p282) target = $region16
      $region15: #{tpu_custom_call.1} parent=11 // pred_region
        _
      $region16: #{tpu_custom_call.1} parent=11 // pred_fallthru
        _
      // Predicated region
      $region17: #{tpu_custom_call.1} parent=11 // pred_check
        %p285 = pneg %p58
      $region18: #{tpu_custom_call.1} parent=11 // pred_check_branch
        %287 = sbr.rel (%p285) target = $region20
      $region19: #{tpu_custom_call.1} parent=11 // pred_region
        _
      $region20: #{tpu_custom_call.1} parent=11 // pred_fallthru
        _
      // Predicated region
      $region21: #{tpu_custom_call.1} parent=11 // pred_check
        %p288 = pneg %p79
      $region22: #{tpu_custom_call.1} parent=11 // pred_check_branch
        %290 = sbr.rel (%p288) target = $region24
      $region23: #{tpu_custom_call.1} parent=11 // pred_region
        _
      $region24: #{tpu_custom_call.1} parent=11 // pred_fallthru
        _
      // Predicated region
      $region25: #{tpu_custom_call.1} parent=11 // pred_check
        %p291 = pneg %p126
      $region26: #{tpu_custom_call.1} parent=11 // pred_check_branch
        %293 = sbr.rel (%p291) target = $region28
      $region27: #{tpu_custom_call.1} parent=11 // pred_region
        _
      $region28: #{tpu_custom_call.1} parent=11 // pred_fallthru
        _
      // Predicated region
      $region29: #{tpu_custom_call.1} parent=11 // pred_check
        %p294 = pneg %p147
      $region30: #{tpu_custom_call.1} parent=11 // pred_check_branch
        %296 = sbr.rel (%p294) target = $region32
      $region31: #{tpu_custom_call.1} parent=11 // pred_region
        _
      $region32: #{tpu_custom_call.1} parent=11 // pred_fallthru
        _
      // Predicated region
      $region33: #{tpu_custom_call.1} parent=11 // pred_check
        %p297 = pneg %p194
      $region34: #{tpu_custom_call.1} parent=11 // pred_check_branch
        %299 = sbr.rel (%p297) target = $region36
      $region35: #{tpu_custom_call.1} parent=11 // pred_region
        _
      $region36: #{tpu_custom_call.1} parent=11 // pred_fallthru
        _
      // Predicated region
      $region37: #{tpu_custom_call.1} parent=11 // pred_check
        %p300 = pneg %p215
      $region38: #{tpu_custom_call.1} parent=11 // pred_check_branch
        %302 = sbr.rel (%p300) target = $region40
      $region39: #{tpu_custom_call.1} parent=11 // pred_region
        _
      $region40: #{tpu_custom_call.1} parent=11 // pred_fallthru
        _
    $region12: #{tpu_custom_call.1} parent=5 // pred_fallthru
      _
    %p303 = scmp.lt.s32.totalorder %s16, 8
    // Predicated region
    $region41: #{tpu_custom_call.1} parent=5 // pred_check
      %p304 = pneg %p303
    $region42: #{tpu_custom_call.1} parent=5 // pred_check_branch
      %306 = sbr.rel (%p304) target = $region44
    $region43: #{tpu_custom_call.1} parent=5 // pred_region
      // Predicated region
      $region45: #{tpu_custom_call.1} parent=43 // pred_check
        %p307 = pneg %p99
      $region46: #{tpu_custom_call.1} parent=43 // pred_check_branch
        %309 = sbr.rel (%p307) target = $region48
      $region47: #{tpu_custom_call.1} parent=43 // pred_region
        %s310 = smul.u32 16, %s16
        %p311 = scmp.lt.s32.totalorder %s310, 127
        %s312 = scalar_select %p311, %s310, 127
        %s313 = scalar_lea.vmem %s3, %s312
        %s314 = smul.u32 16, %s16
      $region48: #{tpu_custom_call.1} parent=43 // pred_fallthru
        _
      // Predicated region
      $region49: #{tpu_custom_call.1} parent=43 // pred_check
        %p315 = pneg %p167
      $region50: #{tpu_custom_call.1} parent=43 // pred_check_branch
        %317 = sbr.rel (%p315) target = $region52
      $region51: #{tpu_custom_call.1} parent=43 // pred_region
        %s318 = smul.u32 16, %s16
        %p319 = scmp.lt.s32.totalorder %s318, 127
        %s320 = scalar_select %p319, %s318, 127
        %s321 = scalar_lea.vmem %s6, %s320
        %s322 = smul.u32 16, %s16
      $region52: #{tpu_custom_call.1} parent=43 // pred_fallthru
        _
      // Predicated region
      $region53: #{tpu_custom_call.1} parent=43 // pred_check
        %p323 = pneg %p235
      $region54: #{tpu_custom_call.1} parent=43 // pred_check_branch
        %325 = sbr.rel (%p323) target = $region56
      $region55: #{tpu_custom_call.1} parent=43 // pred_region
        %s326 = smul.u32 16, %s16
        %p327 = scmp.lt.s32.totalorder %s326, 127
        %s328 = scalar_select %p327, %s326, 127
        %s329 = scalar_lea.vmem %s9, %s328
        %s330 = smul.u32 16, %s16
      $region56: #{tpu_custom_call.1} parent=43 // pred_fallthru
        _
    $region44: #{tpu_custom_call.1} parent=5 // pred_fallthru
      _
    %p331 = scmp.le.s32.totalorder 1, %s16
    %p332 = scmp.lt.s32.totalorder %s16, 9
    %p333 = pnand %p331, %p332
    %p334 = pneg %p333
    // Predicated region
    $region57: #{tpu_custom_call.1} parent=5 // pred_check
      _
    $region58: #{tpu_custom_call.1} parent=5 // pred_check_branch
      %336 = sbr.rel (%p333) target = $region60
    $region59: #{tpu_custom_call.1} parent=5 // pred_region
      %s337 = ssub.s32 %s16, 1
      %p338 = pneg %p37
      %p339 = pneg %p34
      %p340 = pneg %p58
      %p341 = pneg %p55
      %p342 = pneg %p79
      %p343 = pneg %p76
      %s344 = smul.u32 16, %s21
      %p345 = scmp.lt.s32.totalorder %s344, 127
      %s346 = scalar_select %p345, %s344, 127
      %s347 = scalar_lea.vmem %s3, %s346
      %p348 = pneg %p105
      %p349 = pneg %p102
      %p350 = pneg %p126
      %p351 = pneg %p123
      %p352 = pneg %p147
      %p353 = pneg %p144
      %s354 = smul.u32 16, %s21
      %p355 = scmp.lt.s32.totalorder %s354, 127
      %s356 = scalar_select %p355, %s354, 127
      %s357 = scalar_lea.vmem %s6, %s356
      %p358 = pneg %p173
      %p359 = pneg %p170
      %p360 = pneg %p194
      %p361 = pneg %p191
      %p362 = pneg %p215
      %p363 = pneg %p212
      %s364 = smul.u32 16, %s21
      %p365 = scmp.lt.s32.totalorder %s364, 127
      %s366 = scalar_select %p365, %s364, 127
      %s367 = scalar_lea.vmem %s9, %s366
      %p368 = pneg %p241
      %p369 = pneg %p238
      %p370 = pneg %p267
      %p371 = pneg %p264
      %s372 = smul.u32 16, %s21
      %p373 = scmp.lt.s32.totalorder %s372, 127
      %s374 = scalar_select %p373, %s372, 127
      %s375 = smul.addr %s374, 8
      %s376 = scalar_lea.vmem %s10, %s375
      %s377 = smul.u32 16, %s21
      %p378 = scmp.lt.s32.totalorder %s377, 127
      %s379 = scalar_select %p378, %s377, 127
      %s380 = scalar_lea.vmem %s3, %s379
      %s381 = smul.u32 16, %s21
      %s382 = smul.u32 16, %s21
      %p383 = scmp.lt.s32.totalorder %s382, 127
      %s384 = scalar_select %p383, %s382, 127
      %s385 = scalar_lea.vmem %s6, %s384
      %s386 = smul.u32 16, %s21
      %s387 = smul.u32 16, %s21
      %p388 = scmp.lt.s32.totalorder %s387, 127
      %s389 = scalar_select %p388, %s387, 127
      %s390 = scalar_lea.vmem %s9, %s389
      %s391 = smul.u32 16, %s21
      %s392 = smul.u32 16, %s21
      %p393 = scmp.lt.s32.totalorder %s392, 127
      %s394 = scalar_select %p393, %s392, 127
      %s395 = smul.addr %s394, 8
      %s396 = scalar_lea.vmem %s10, %s395
      %s397 = smul.u32 16, %s21
      %v399 = vld [vmem:[%s1] sm:$0xf]
      %v400 = vld [vmem:[%s1 + $0x4] sm:$0xf]
      %v401 = vld [vmem:[%s1 + $0x8] sm:$0xf]
      %v402 = vld [vmem:[%s1 + $0xc] sm:$0xf]
      %v403 = vld [vmem:[%s1 + $0x10] sm:$0xf]
      %v404 = vld [vmem:[%s1 + $0x14] sm:$0xf]
      %v405 = vld [vmem:[%s1 + $0x18] sm:$0xf]
      %v406 = vld [vmem:[%s1 + $0x1c] sm:$0xf]
      %v407 = vld [vmem:[%s1 + $0x20] sm:$0xf]
      %v408 = vld [vmem:[%s1 + $0x24] sm:$0xf]
      %v409 = vld [vmem:[%s1 + $0x28] sm:$0xf]
      %v410 = vld [vmem:[%s1 + $0x2c] sm:$0xf]
      %v411 = vld [vmem:[%s1 + $0x30] sm:$0xf]
      %v412 = vld [vmem:[%s1 + $0x34] sm:$0xf]
      %v413 = vld [vmem:[%s1 + $0x38] sm:$0xf]
      %v414 = vld [vmem:[%s1 + $0x3c] sm:$0xf]
      %v415 = vld [vmem:[%s2] sm:$0x1]
      %v416 = vld [vmem:[%s380] sm:$0x1]
      %v417 = vld [vmem:[%s380 + $0x1] sm:$0x1]
      %v418 = vld [vmem:[%s380 + $0x2] sm:$0x1]
      %v419 = vld [vmem:[%s380 + $0x3] sm:$0x1]
      %v420 = vld [vmem:[%s380 + $0x4] sm:$0x1]
      %v421 = vld [vmem:[%s380 + $0x5] sm:$0x1]
      %v422 = vld [vmem:[%s380 + $0x6] sm:$0x1]
      %v423 = vld [vmem:[%s380 + $0x7] sm:$0x1]
      %v424 = vld [vmem:[%s380 + $0x8] sm:$0x1]
      %v425 = vld [vmem:[%s380 + $0x9] sm:$0x1]
      %v426 = vld [vmem:[%s380 + $0xa] sm:$0x1]
      %v427 = vld [vmem:[%s380 + $0xb] sm:$0x1]
      %v428 = vld [vmem:[%s380 + $0xc] sm:$0x1]
      %v429 = vld [vmem:[%s380 + $0xd] sm:$0x1]
      %v430 = vld [vmem:[%s380 + $0xe] sm:$0x1]
      %v431 = vld [vmem:[%s380 + $0xf] sm:$0x1]
      %v432 = vld [vmem:[%s0] sm:$0xff]
      %v433 = vpack.c.bf16 %v432, %v432
      %v435 = vlaneseq
      %v436 = vshrl.u32 %v435, 7
      %v437 = vsub.s32 0, %v436
      %v438 = vrot.slane %v415, %v437
      %v456 = vunpack.c.l.b16 %v399
      %v457 = vunpack.c.l.b16 %v400
      %v458 = vunpack.c.l.b16 %v401
      %v459 = vunpack.c.l.b16 %v402
      %v460 = vunpack.c.l.b16 %v403
      %v461 = vunpack.c.l.b16 %v404
      %v462 = vunpack.c.l.b16 %v405
      %v463 = vunpack.c.l.b16 %v406
      %v464 = vunpack.c.l.b16 %v407
      %v465 = vunpack.c.l.b16 %v408
      %v466 = vunpack.c.l.b16 %v409
      %v467 = vunpack.c.l.b16 %v410
      %v468 = vunpack.c.l.b16 %v411
      %v469 = vunpack.c.l.b16 %v412
      %v470 = vunpack.c.l.b16 %v413
      %v471 = vunpack.c.l.b16 %v414
      %v472 = vpack.c.b16 %v457, %v456
      %v473 = vpack.c.b16 %v459, %v458
      %v474 = vpack.c.b16 %v461, %v460
      %v475 = vpack.c.b16 %v463, %v462
      %v476 = vpack.c.b16 %v465, %v464
      %v477 = vpack.c.b16 %v467, %v466
      %v478 = vpack.c.b16 %v469, %v468
      %v479 = vpack.c.b16 %v471, %v470
      %488 = vmatprep.subr.bf16.mxu0 0
      %489 = vmatpush1.bf16.msra.mxu0 %v479
      %490 = vmatprep.subr.bf16.mxu0 0
      %491 = vmatpush1.bf16.msra.mxu0 %v478
      %492 = vmatprep.subr.bf16.mxu0 0
      %493 = vmatpush1.bf16.msra.mxu0 %v477
      %494 = vmatprep.subr.bf16.mxu0 0
      %495 = vmatpush1.bf16.msra.mxu0 %v476
      %496 = vmatprep.subr.bf16.mxu0 0
      %497 = vmatpush1.bf16.msra.mxu0 %v475
      %498 = vmatprep.subr.bf16.mxu0 0
      %499 = vmatpush1.bf16.msra.mxu0 %v474
      %500 = vmatprep.subr.bf16.mxu0 0
      %501 = vmatpush1.bf16.msra.mxu0 %v473
      %502 = vmatprep.subr.bf16.mxu0 0
      %503 = vmatpush1.bf16.msra.mxu0 %v472
      %504 = vmatprep.subr.bf16.mxu0 0
      %505 = vmatpush2.bf16.msra.mxu0 0
      %506 = vmatprep.subr.bf16.mxu0 0
      %507 = vmatpush2.bf16.msra.mxu0 0
      %508 = vmatprep.subr.bf16.mxu0 0
      %509 = vmatpush2.bf16.msra.mxu0 0
      %510 = vmatprep.subr.bf16.mxu0 0
      %511 = vmatpush2.bf16.msra.mxu0 0
      %512 = vmatprep.subr.bf16.mxu0 0
      %513 = vmatpush2.bf16.msra.mxu0 0
      %514 = vmatprep.subr.bf16.mxu0 0
      %515 = vmatpush2.bf16.msra.mxu0 0
      %516 = vmatprep.subr.bf16.mxu0 0
      %517 = vmatpush2.bf16.msra.mxu0 0
      %518 = vmatprep.subr.bf16.mxu0 0
      %519 = vmatpush2.bf16.msra.mxu0 0
      %520 = vmatprep.mubr.bf16.mxu0 0
      %521 = vmatmul.mubr.bf16.gmra.mxu0 %v433
      %v522 = vpop.f32.mrf.mxu0
      %v523 = vadd.f32 %v438, %v522
      %v524 = vpop.f32.mrf.mxu0
      %v525 = vpop.f32.mrf.mxu0
      %v526 = vpop.f32.mrf.mxu0
      %527 = vdwg.mxu0
      %v528 = vunpack.c.l.bf16 %v416
      %v529 = vunpack.c.l.bf16 %v417
      %v530 = vunpack.c.l.bf16 %v418
      %v531 = vunpack.c.l.bf16 %v419
      %v532 = vunpack.c.l.bf16 %v420
      %v533 = vunpack.c.l.bf16 %v421
      %v534 = vunpack.c.l.bf16 %v422
      %v535 = vunpack.c.l.bf16 %v423
      %v536 = vunpack.c.l.bf16 %v424
      %v537 = vunpack.c.l.bf16 %v425
      %v538 = vunpack.c.l.bf16 %v426
      %v539 = vunpack.c.l.bf16 %v427
      %v540 = vunpack.c.l.bf16 %v428
      %v541 = vunpack.c.l.bf16 %v429
      %v542 = vunpack.c.l.bf16 %v430
      %v543 = vunpack.c.l.bf16 %v431
      %v544 = vlaneseq
      %v545 = vshrl.u32 %v544, 7
      %v546 = vsub.s32 0, %v545
      %v547 = vrot.slane %v528, %v546
      %v548 = vlaneseq
      %v549 = vshrl.u32 %v548, 7
      %v550 = vsub.s32 0, %v549
      %v551 = vrot.slane %v529, %v550
      %v552 = vlaneseq
      %v553 = vshrl.u32 %v552, 7
      %v554 = vsub.s32 0, %v553
      %v555 = vrot.slane %v530, %v554
      %v556 = vlaneseq
      %v557 = vshrl.u32 %v556, 7
      %v558 = vsub.s32 0, %v557
      %v559 = vrot.slane %v531, %v558
      %v560 = vlaneseq
      %v561 = vshrl.u32 %v560, 7
      %v562 = vsub.s32 0, %v561
      %v563 = vrot.slane %v532, %v562
      %v564 = vlaneseq
      %v565 = vshrl.u32 %v564, 7
      %v566 = vsub.s32 0, %v565
      %v567 = vrot.slane %v533, %v566
      %v568 = vlaneseq
      %v569 = vshrl.u32 %v568, 7
      %v570 = vsub.s32 0, %v569
      %v571 = vrot.slane %v534, %v570
      %v572 = vlaneseq
      %v573 = vshrl.u32 %v572, 7
      %v574 = vsub.s32 0, %v573
      %v575 = vrot.slane %v535, %v574
      %v576 = vlaneseq
      %v577 = vshrl.u32 %v576, 7
      %v578 = vsub.s32 0, %v577
      %v579 = vrot.slane %v536, %v578
      %v580 = vlaneseq
      %v581 = vshrl.u32 %v580, 7
      %v582 = vsub.s32 0, %v581
      %v583 = vrot.slane %v537, %v582
      %v584 = vlaneseq
      %v585 = vshrl.u32 %v584, 7
      %v586 = vsub.s32 0, %v585
      %v587 = vrot.slane %v538, %v586
      %v588 = vlaneseq
      %v589 = vshrl.u32 %v588, 7
      %v590 = vsub.s32 0, %v589
      %v591 = vrot.slane %v539, %v590
      %v592 = vlaneseq
      %v593 = vshrl.u32 %v592, 7
      %v594 = vsub.s32 0, %v593
      %v595 = vrot.slane %v540, %v594
      %v596 = vlaneseq
      %v597 = vshrl.u32 %v596, 7
      %v598 = vsub.s32 0, %v597
      %v599 = vrot.slane %v541, %v598
      %v600 = vlaneseq
      %v601 = vshrl.u32 %v600, 7
      %v602 = vsub.s32 0, %v601
      %v603 = vrot.slane %v542, %v602
      %v604 = vlaneseq
      %v605 = vshrl.u32 %v604, 7
      %v606 = vsub.s32 0, %v605
      %v607 = vrot.slane %v543, %v606
      %v608 = vmul.f32 %v547, %v523
      %v609 = vmul.f32 %v551, %v523
      %v610 = vmul.f32 %v555, %v523
      %v611 = vmul.f32 %v559, %v523
      %v612 = vmul.f32 %v563, %v523
      %v613 = vmul.f32 %v567, %v523
      %v614 = vmul.f32 %v571, %v523
      %v615 = vmul.f32 %v575, %v523
      %v616 = vmul.f32 %v579, %v523
      %v617 = vmul.f32 %v583, %v523
      %v618 = vmul.f32 %v587, %v523
      %v619 = vmul.f32 %v591, %v523
      %v620 = vmul.f32 %v595, %v523
      %v621 = vmul.f32 %v599, %v523
      %v622 = vmul.f32 %v603, %v523
      %v623 = vmul.f32 %v607, %v523
      %v624 = vmax.f32 %v608, 0.0
      %v625 = vmax.f32 %v609, 0.0
      %v626 = vmax.f32 %v610, 0.0
      %v627 = vmax.f32 %v611, 0.0
      %v628 = vmax.f32 %v612, 0.0
      %v629 = vmax.f32 %v613, 0.0
      %v630 = vmax.f32 %v614, 0.0
      %v631 = vmax.f32 %v615, 0.0
      %v632 = vmax.f32 %v616, 0.0
      %v633 = vmax.f32 %v617, 0.0
      %v634 = vmax.f32 %v618, 0.0
      %v635 = vmax.f32 %v619, 0.0
      %v636 = vmax.f32 %v620, 0.0
      %v637 = vmax.f32 %v621, 0.0
      %v638 = vmax.f32 %v622, 0.0
      %v639 = vmax.f32 %v623, 0.0
      %v640 = vpack.c.bf16 %v625, %v624
      %v641 = vpack.c.bf16 %v627, %v626
      %v642 = vpack.c.bf16 %v629, %v628
      %v643 = vpack.c.bf16 %v631, %v630
      %v644 = vpack.c.bf16 %v633, %v632
      %v645 = vpack.c.bf16 %v635, %v634
      %v646 = vpack.c.bf16 %v637, %v636
      %v647 = vpack.c.bf16 %v639, %v638
      %v648 = vld [vmem:[%s4] sm:$0xf]
      %v649 = vld [vmem:[%s4 + $0x4] sm:$0xf]
      %v650 = vld [vmem:[%s4 + $0x8] sm:$0xf]
      %v651 = vld [vmem:[%s4 + $0xc] sm:$0xf]
      %v652 = vld [vmem:[%s4 + $0x10] sm:$0xf]
      %v653 = vld [vmem:[%s4 + $0x14] sm:$0xf]
      %v654 = vld [vmem:[%s4 + $0x18] sm:$0xf]
      %v655 = vld [vmem:[%s4 + $0x1c] sm:$0xf]
      %v656 = vld [vmem:[%s4 + $0x20] sm:$0xf]
      %v657 = vld [vmem:[%s4 + $0x24] sm:$0xf]
      %v658 = vld [vmem:[%s4 + $0x28] sm:$0xf]
      %v659 = vld [vmem:[%s4 + $0x2c] sm:$0xf]
      %v660 = vld [vmem:[%s4 + $0x30] sm:$0xf]
      %v661 = vld [vmem:[%s4 + $0x34] sm:$0xf]
      %v662 = vld [vmem:[%s4 + $0x38] sm:$0xf]
      %v663 = vld [vmem:[%s4 + $0x3c] sm:$0xf]
      %v664 = vld [vmem:[%s5] sm:$0x1]
      %v665 = vld [vmem:[%s385] sm:$0x1]
      %v666 = vld [vmem:[%s385 + $0x1] sm:$0x1]
      %v667 = vld [vmem:[%s385 + $0x2] sm:$0x1]
      %v668 = vld [vmem:[%s385 + $0x3] sm:$0x1]
      %v669 = vld [vmem:[%s385 + $0x4] sm:$0x1]
      %v670 = vld [vmem:[%s385 + $0x5] sm:$0x1]
      %v671 = vld [vmem:[%s385 + $0x6] sm:$0x1]
      %v672 = vld [vmem:[%s385 + $0x7] sm:$0x1]
      %v673 = vld [vmem:[%s385 + $0x8] sm:$0x1]
      %v674 = vld [vmem:[%s385 + $0x9] sm:$0x1]
      %v675 = vld [vmem:[%s385 + $0xa] sm:$0x1]
      %v676 = vld [vmem:[%s385 + $0xb] sm:$0x1]
      %v677 = vld [vmem:[%s385 + $0xc] sm:$0x1]
      %v678 = vld [vmem:[%s385 + $0xd] sm:$0x1]
      %v679 = vld [vmem:[%s385 + $0xe] sm:$0x1]
      %v680 = vld [vmem:[%s385 + $0xf] sm:$0x1]
      %v682 = vlaneseq
      %v683 = vshrl.u32 %v682, 7
      %v684 = vsub.s32 0, %v683
      %v685 = vrot.slane %v664, %v684
      %v703 = vunpack.c.l.b16 %v648
      %v704 = vunpack.c.l.b16 %v649
      %v705 = vunpack.c.l.b16 %v650
      %v706 = vunpack.c.l.b16 %v651
      %v707 = vunpack.c.l.b16 %v652
      %v708 = vunpack.c.l.b16 %v653
      %v709 = vunpack.c.l.b16 %v654
      %v710 = vunpack.c.l.b16 %v655
      %v711 = vunpack.c.l.b16 %v656
      %v712 = vunpack.c.l.b16 %v657
      %v713 = vunpack.c.l.b16 %v658
      %v714 = vunpack.c.l.b16 %v659
      %v715 = vunpack.c.l.b16 %v660
      %v716 = vunpack.c.l.b16 %v661
      %v717 = vunpack.c.l.b16 %v662
      %v718 = vunpack.c.l.b16 %v663
      %v719 = vpack.c.b16 %v704, %v703
      %v720 = vpack.c.b16 %v706, %v705
      %v721 = vpack.c.b16 %v708, %v707
      %v722 = vpack.c.b16 %v710, %v709
      %v723 = vpack.c.b16 %v712, %v711
      %v724 = vpack.c.b16 %v714, %v713
      %v725 = vpack.c.b16 %v716, %v715
      %v726 = vpack.c.b16 %v718, %v717
      %735 = vmatprep.subr.bf16.mxu0 0
      %736 = vmatpush1.bf16.msra.mxu0 %v726
      %737 = vmatprep.subr.bf16.mxu0 0
      %738 = vmatpush1.bf16.msra.mxu0 %v725
      %739 = vmatprep.subr.bf16.mxu0 0
      %740 = vmatpush1.bf16.msra.mxu0 %v724
      %741 = vmatprep.subr.bf16.mxu0 0
      %742 = vmatpush1.bf16.msra.mxu0 %v723
      %743 = vmatprep.subr.bf16.mxu0 0
      %744 = vmatpush1.bf16.msra.mxu0 %v722
      %745 = vmatprep.subr.bf16.mxu0 0
      %746 = vmatpush1.bf16.msra.mxu0 %v721
      %747 = vmatprep.subr.bf16.mxu0 0
      %748 = vmatpush1.bf16.msra.mxu0 %v720
      %749 = vmatprep.subr.bf16.mxu0 0
      %750 = vmatpush1.bf16.msra.mxu0 %v719
      %751 = vmatprep.subr.bf16.mxu0 0
      %752 = vmatpush2.bf16.msra.mxu0 0
      %753 = vmatprep.subr.bf16.mxu0 0
      %754 = vmatpush2.bf16.msra.mxu0 0
      %755 = vmatprep.subr.bf16.mxu0 0
      %756 = vmatpush2.bf16.msra.mxu0 0
      %757 = vmatprep.subr.bf16.mxu0 0
      %758 = vmatpush2.bf16.msra.mxu0 0
      %759 = vmatprep.subr.bf16.mxu0 0
      %760 = vmatpush2.bf16.msra.mxu0 0
      %761 = vmatprep.subr.bf16.mxu0 0
      %762 = vmatpush2.bf16.msra.mxu0 0
      %763 = vmatprep.subr.bf16.mxu0 0
      %764 = vmatpush2.bf16.msra.mxu0 0
      %765 = vmatprep.subr.bf16.mxu0 0
      %766 = vmatpush2.bf16.msra.mxu0 0
      %767 = vmatprep.mubr.bf16.mxu0 0
      %768 = vmatmul.mubr.bf16.gmra.mxu0 %v640
      %v769 = vpop.f32.mrf.mxu0
      %v770 = vadd.f32 %v685, %v769
      %v771 = vpop.f32.mrf.mxu0
      %v772 = vpop.f32.mrf.mxu0
      %v773 = vadd.f32 %v685, %v772
      %v774 = vpop.f32.mrf.mxu0
      %775 = vmatprep.mubr.bf16.mxu0 0
      %776 = vmatmul.mubr.bf16.gmra.mxu0 %v641
      %v777 = vpop.f32.mrf.mxu0
      %v778 = vadd.f32 %v685, %v777
      %v779 = vpop.f32.mrf.mxu0
      %v780 = vpop.f32.mrf.mxu0
      %v781 = vadd.f32 %v685, %v780
      %v782 = vpop.f32.mrf.mxu0
      %783 = vmatprep.mubr.bf16.mxu0 0
      %784 = vmatmul.mubr.bf16.gmra.mxu0 %v642
      %v785 = vpop.f32.mrf.mxu0
      %v786 = vadd.f32 %v685, %v785
      %v787 = vpop.f32.mrf.mxu0
      %v788 = vpop.f32.mrf.mxu0
      %v789 = vadd.f32 %v685, %v788
      %v790 = vpop.f32.mrf.mxu0
      %791 = vmatprep.mubr.bf16.mxu0 0
      %792 = vmatmul.mubr.bf16.gmra.mxu0 %v643
      %v793 = vpop.f32.mrf.mxu0
      %v794 = vadd.f32 %v685, %v793
      %v795 = vpop.f32.mrf.mxu0
      %v796 = vpop.f32.mrf.mxu0
      %v797 = vadd.f32 %v685, %v796
      %v798 = vpop.f32.mrf.mxu0
      %799 = vmatprep.mubr.bf16.mxu0 0
      %800 = vmatmul.mubr.bf16.gmra.mxu0 %v644
      %v801 = vpop.f32.mrf.mxu0
      %v802 = vadd.f32 %v685, %v801
      %v803 = vpop.f32.mrf.mxu0
      %v804 = vpop.f32.mrf.mxu0
      %v805 = vadd.f32 %v685, %v804
      %v806 = vpop.f32.mrf.mxu0
      %807 = vmatprep.mubr.bf16.mxu0 0
      %808 = vmatmul.mubr.bf16.gmra.mxu0 %v645
      %v809 = vpop.f32.mrf.mxu0
      %v810 = vadd.f32 %v685, %v809
      %v811 = vpop.f32.mrf.mxu0
      %v812 = vpop.f32.mrf.mxu0
      %v813 = vadd.f32 %v685, %v812
      %v814 = vpop.f32.mrf.mxu0
      %815 = vmatprep.mubr.bf16.mxu0 0
      %816 = vmatmul.mubr.bf16.gmra.mxu0 %v646
      %v817 = vpop.f32.mrf.mxu0
      %v818 = vadd.f32 %v685, %v817
      %v819 = vpop.f32.mrf.mxu0
      %v820 = vpop.f32.mrf.mxu0
      %v821 = vadd.f32 %v685, %v820
      %v822 = vpop.f32.mrf.mxu0
      %823 = vmatprep.mubr.bf16.mxu0 0
      %824 = vmatmul.mubr.bf16.gmra.mxu0 %v647
      %v825 = vpop.f32.mrf.mxu0
      %v826 = vadd.f32 %v685, %v825
      %v827 = vpop.f32.mrf.mxu0
      %v828 = vpop.f32.mrf.mxu0
      %v829 = vadd.f32 %v685, %v828
      %v830 = vpop.f32.mrf.mxu0
      %831 = vdwg.mxu0
      %v832 = vunpack.c.l.bf16 %v665
      %v833 = vunpack.c.l.bf16 %v666
      %v834 = vunpack.c.l.bf16 %v667
      %v835 = vunpack.c.l.bf16 %v668
      %v836 = vunpack.c.l.bf16 %v669
      %v837 = vunpack.c.l.bf16 %v670
      %v838 = vunpack.c.l.bf16 %v671
      %v839 = vunpack.c.l.bf16 %v672
      %v840 = vunpack.c.l.bf16 %v673
      %v841 = vunpack.c.l.bf16 %v674
      %v842 = vunpack.c.l.bf16 %v675
      %v843 = vunpack.c.l.bf16 %v676
      %v844 = vunpack.c.l.bf16 %v677
      %v845 = vunpack.c.l.bf16 %v678
      %v846 = vunpack.c.l.bf16 %v679
      %v847 = vunpack.c.l.bf16 %v680
      %v848 = vlaneseq
      %v849 = vshrl.u32 %v848, 7
      %v850 = vsub.s32 0, %v849
      %v851 = vrot.slane %v832, %v850
      %v852 = vlaneseq
      %v853 = vshrl.u32 %v852, 7
      %v854 = vsub.s32 0, %v853
      %v855 = vrot.slane %v833, %v854
      %v856 = vlaneseq
      %v857 = vshrl.u32 %v856, 7
      %v858 = vsub.s32 0, %v857
      %v859 = vrot.slane %v834, %v858
      %v860 = vlaneseq
      %v861 = vshrl.u32 %v860, 7
      %v862 = vsub.s32 0, %v861
      %v863 = vrot.slane %v835, %v862
      %v864 = vlaneseq
      %v865 = vshrl.u32 %v864, 7
      %v866 = vsub.s32 0, %v865
      %v867 = vrot.slane %v836, %v866
      %v868 = vlaneseq
      %v869 = vshrl.u32 %v868, 7
      %v870 = vsub.s32 0, %v869
      %v871 = vrot.slane %v837, %v870
      %v872 = vlaneseq
      %v873 = vshrl.u32 %v872, 7
      %v874 = vsub.s32 0, %v873
      %v875 = vrot.slane %v838, %v874
      %v876 = vlaneseq
      %v877 = vshrl.u32 %v876, 7
      %v878 = vsub.s32 0, %v877
      %v879 = vrot.slane %v839, %v878
      %v880 = vlaneseq
      %v881 = vshrl.u32 %v880, 7
      %v882 = vsub.s32 0, %v881
      %v883 = vrot.slane %v840, %v882
      %v884 = vlaneseq
      %v885 = vshrl.u32 %v884, 7
      %v886 = vsub.s32 0, %v885
      %v887 = vrot.slane %v841, %v886
      %v888 = vlaneseq
      %v889 = vshrl.u32 %v888, 7
      %v890 = vsub.s32 0, %v889
      %v891 = vrot.slane %v842, %v890
      %v892 = vlaneseq
      %v893 = vshrl.u32 %v892, 7
      %v894 = vsub.s32 0, %v893
      %v895 = vrot.slane %v843, %v894
      %v896 = vlaneseq
      %v897 = vshrl.u32 %v896, 7
      %v898 = vsub.s32 0, %v897
      %v899 = vrot.slane %v844, %v898
      %v900 = vlaneseq
      %v901 = vshrl.u32 %v900, 7
      %v902 = vsub.s32 0, %v901
      %v903 = vrot.slane %v845, %v902
      %v904 = vlaneseq
      %v905 = vshrl.u32 %v904, 7
      %v906 = vsub.s32 0, %v905
      %v907 = vrot.slane %v846, %v906
      %v908 = vlaneseq
      %v909 = vshrl.u32 %v908, 7
      %v910 = vsub.s32 0, %v909
      %v911 = vrot.slane %v847, %v910
      %v912 = vmul.f32 %v851, %v770
      %v913 = vmul.f32 %v855, %v773
      %v914 = vmul.f32 %v859, %v778
      %v915 = vmul.f32 %v863, %v781
      %v916 = vmul.f32 %v867, %v786
      %v917 = vmul.f32 %v871, %v789
      %v918 = vmul.f32 %v875, %v794
      %v919 = vmul.f32 %v879, %v797
      %v920 = vmul.f32 %v883, %v802
      %v921 = vmul.f32 %v887, %v805
      %v922 = vmul.f32 %v891, %v810
      %v923 = vmul.f32 %v895, %v813
      %v924 = vmul.f32 %v899, %v818
      %v925 = vmul.f32 %v903, %v821
      %v926 = vmul.f32 %v907, %v826
      %v927 = vmul.f32 %v911, %v829
      %v928 = vmax.f32 %v912, 0.0
      %v929 = vmax.f32 %v913, 0.0
      %v930 = vmax.f32 %v914, 0.0
      %v931 = vmax.f32 %v915, 0.0
      %v932 = vmax.f32 %v916, 0.0
      %v933 = vmax.f32 %v917, 0.0
      %v934 = vmax.f32 %v918, 0.0
      %v935 = vmax.f32 %v919, 0.0
      %v936 = vmax.f32 %v920, 0.0
      %v937 = vmax.f32 %v921, 0.0
      %v938 = vmax.f32 %v922, 0.0
      %v939 = vmax.f32 %v923, 0.0
      %v940 = vmax.f32 %v924, 0.0
      %v941 = vmax.f32 %v925, 0.0
      %v942 = vmax.f32 %v926, 0.0
      %v943 = vmax.f32 %v927, 0.0
      %v944 = vpack.c.bf16 %v929, %v928
      %v945 = vpack.c.bf16 %v931, %v930
      %v946 = vpack.c.bf16 %v933, %v932
      %v947 = vpack.c.bf16 %v935, %v934
      %v948 = vpack.c.bf16 %v937, %v936
      %v949 = vpack.c.bf16 %v939, %v938
      %v950 = vpack.c.bf16 %v941, %v940
      %v951 = vpack.c.bf16 %v943, %v942
      %v952 = vld [vmem:[%s7] sm:$0xf]
      %v953 = vld [vmem:[%s7 + $0x4] sm:$0xf]
      %v954 = vld [vmem:[%s7 + $0x8] sm:$0xf]
      %v955 = vld [vmem:[%s7 + $0xc] sm:$0xf]
      %v956 = vld [vmem:[%s7 + $0x10] sm:$0xf]
      %v957 = vld [vmem:[%s7 + $0x14] sm:$0xf]
      %v958 = vld [vmem:[%s7 + $0x18] sm:$0xf]
      %v959 = vld [vmem:[%s7 + $0x1c] sm:$0xf]
      %v960 = vld [vmem:[%s7 + $0x20] sm:$0xf]
      %v961 = vld [vmem:[%s7 + $0x24] sm:$0xf]
      %v962 = vld [vmem:[%s7 + $0x28] sm:$0xf]
      %v963 = vld [vmem:[%s7 + $0x2c] sm:$0xf]
      %v964 = vld [vmem:[%s7 + $0x30] sm:$0xf]
      %v965 = vld [vmem:[%s7 + $0x34] sm:$0xf]
      %v966 = vld [vmem:[%s7 + $0x38] sm:$0xf]
      %v967 = vld [vmem:[%s7 + $0x3c] sm:$0xf]
      %v968 = vld [vmem:[%s8] sm:$0x1]
      %v969 = vld [vmem:[%s390] sm:$0x1]
      %v970 = vld [vmem:[%s390 + $0x1] sm:$0x1]
      %v971 = vld [vmem:[%s390 + $0x2] sm:$0x1]
      %v972 = vld [vmem:[%s390 + $0x3] sm:$0x1]
      %v973 = vld [vmem:[%s390 + $0x4] sm:$0x1]
      %v974 = vld [vmem:[%s390 + $0x5] sm:$0x1]
      %v975 = vld [vmem:[%s390 + $0x6] sm:$0x1]
      %v976 = vld [vmem:[%s390 + $0x7] sm:$0x1]
      %v977 = vld [vmem:[%s390 + $0x8] sm:$0x1]
      %v978 = vld [vmem:[%s390 + $0x9] sm:$0x1]
      %v979 = vld [vmem:[%s390 + $0xa] sm:$0x1]
      %v980 = vld [vmem:[%s390 + $0xb] sm:$0x1]
      %v981 = vld [vmem:[%s390 + $0xc] sm:$0x1]
      %v982 = vld [vmem:[%s390 + $0xd] sm:$0x1]
      %v983 = vld [vmem:[%s390 + $0xe] sm:$0x1]
      %v984 = vld [vmem:[%s390 + $0xf] sm:$0x1]
      %v986 = vlaneseq
      %v987 = vshrl.u32 %v986, 7
      %v988 = vsub.s32 0, %v987
      %v989 = vrot.slane %v968, %v988
      %v1007 = vunpack.c.l.b16 %v952
      %v1008 = vunpack.c.l.b16 %v953
      %v1009 = vunpack.c.l.b16 %v954
      %v1010 = vunpack.c.l.b16 %v955
      %v1011 = vunpack.c.l.b16 %v956
      %v1012 = vunpack.c.l.b16 %v957
      %v1013 = vunpack.c.l.b16 %v958
      %v1014 = vunpack.c.l.b16 %v959
      %v1015 = vunpack.c.l.b16 %v960
      %v1016 = vunpack.c.l.b16 %v961
      %v1017 = vunpack.c.l.b16 %v962
      %v1018 = vunpack.c.l.b16 %v963
      %v1019 = vunpack.c.l.b16 %v964
      %v1020 = vunpack.c.l.b16 %v965
      %v1021 = vunpack.c.l.b16 %v966
      %v1022 = vunpack.c.l.b16 %v967
      %v1023 = vpack.c.b16 %v1008, %v1007
      %v1024 = vpack.c.b16 %v1010, %v1009
      %v1025 = vpack.c.b16 %v1012, %v1011
      %v1026 = vpack.c.b16 %v1014, %v1013
      %v1027 = vpack.c.b16 %v1016, %v1015
      %v1028 = vpack.c.b16 %v1018, %v1017
      %v1029 = vpack.c.b16 %v1020, %v1019
      %v1030 = vpack.c.b16 %v1022, %v1021
      %1039 = vmatprep.subr.bf16.mxu0 0
      %1040 = vmatpush1.bf16.msra.mxu0 %v1030
      %1041 = vmatprep.subr.bf16.mxu0 0
      %1042 = vmatpush1.bf16.msra.mxu0 %v1029
      %1043 = vmatprep.subr.bf16.mxu0 0
      %1044 = vmatpush1.bf16.msra.mxu0 %v1028
      %1045 = vmatprep.subr.bf16.mxu0 0
      %1046 = vmatpush1.bf16.msra.mxu0 %v1027
      %1047 = vmatprep.subr.bf16.mxu0 0
      %1048 = vmatpush1.bf16.msra.mxu0 %v1026
      %1049 = vmatprep.subr.bf16.mxu0 0
      %1050 = vmatpush1.bf16.msra.mxu0 %v1025
      %1051 = vmatprep.subr.bf16.mxu0 0
      %1052 = vmatpush1.bf16.msra.mxu0 %v1024
      %1053 = vmatprep.subr.bf16.mxu0 0
      %1054 = vmatpush1.bf16.msra.mxu0 %v1023
      %1055 = vmatprep.subr.bf16.mxu0 0
      %1056 = vmatpush2.bf16.msra.mxu0 0
      %1057 = vmatprep.subr.bf16.mxu0 0
      %1058 = vmatpush2.bf16.msra.mxu0 0
      %1059 = vmatprep.subr.bf16.mxu0 0
      %1060 = vmatpush2.bf16.msra.mxu0 0
      %1061 = vmatprep.subr.bf16.mxu0 0
      %1062 = vmatpush2.bf16.msra.mxu0 0
      %1063 = vmatprep.subr.bf16.mxu0 0
      %1064 = vmatpush2.bf16.msra.mxu0 0
      %1065 = vmatprep.subr.bf16.mxu0 0
      %1066 = vmatpush2.bf16.msra.mxu0 0
      %1067 = vmatprep.subr.bf16.mxu0 0
      %1068 = vmatpush2.bf16.msra.mxu0 0
      %1069 = vmatprep.subr.bf16.mxu0 0
      %1070 = vmatpush2.bf16.msra.mxu0 0
      %1071 = vmatprep.mubr.bf16.mxu0 0
      %1072 = vmatmul.mubr.bf16.gmra.mxu0 %v944
      %v1073 = vpop.f32.mrf.mxu0
      %v1074 = vadd.f32 %v989, %v1073
      %v1075 = vpop.f32.mrf.mxu0
      %v1076 = vpop.f32.mrf.mxu0
      %v1077 = vadd.f32 %v989, %v1076
      %v1078 = vpop.f32.mrf.mxu0
      %1079 = vmatprep.mubr.bf16.mxu0 0
      %1080 = vmatmul.mubr.bf16.gmra.mxu0 %v945
      %v1081 = vpop.f32.mrf.mxu0
      %v1082 = vadd.f32 %v989, %v1081
      %v1083 = vpop.f32.mrf.mxu0
      %v1084 = vpop.f32.mrf.mxu0
      %v1085 = vadd.f32 %v989, %v1084
      %v1086 = vpop.f32.mrf.mxu0
      %1087 = vmatprep.mubr.bf16.mxu0 0
      %1088 = vmatmul.mubr.bf16.gmra.mxu0 %v946
      %v1089 = vpop.f32.mrf.mxu0
      %v1090 = vadd.f32 %v989, %v1089
      %v1091 = vpop.f32.mrf.mxu0
      %v1092 = vpop.f32.mrf.mxu0
      %v1093 = vadd.f32 %v989, %v1092
      %v1094 = vpop.f32.mrf.mxu0
      %1095 = vmatprep.mubr.bf16.mxu0 0
      %1096 = vmatmul.mubr.bf16.gmra.mxu0 %v947
      %v1097 = vpop.f32.mrf.mxu0
      %v1098 = vadd.f32 %v989, %v1097
      %v1099 = vpop.f32.mrf.mxu0
      %v1100 = vpop.f32.mrf.mxu0
      %v1101 = vadd.f32 %v989, %v1100
      %v1102 = vpop.f32.mrf.mxu0
      %1103 = vmatprep.mubr.bf16.mxu0 0
      %1104 = vmatmul.mubr.bf16.gmra.mxu0 %v948
      %v1105 = vpop.f32.mrf.mxu0
      %v1106 = vadd.f32 %v989, %v1105
      %v1107 = vpop.f32.mrf.mxu0
      %v1108 = vpop.f32.mrf.mxu0
      %v1109 = vadd.f32 %v989, %v1108
      %v1110 = vpop.f32.mrf.mxu0
      %1111 = vmatprep.mubr.bf16.mxu0 0
      %1112 = vmatmul.mubr.bf16.gmra.mxu0 %v949
      %v1113 = vpop.f32.mrf.mxu0
      %v1114 = vadd.f32 %v989, %v1113
      %v1115 = vpop.f32.mrf.mxu0
      %v1116 = vpop.f32.mrf.mxu0
      %v1117 = vadd.f32 %v989, %v1116
      %v1118 = vpop.f32.mrf.mxu0
      %1119 = vmatprep.mubr.bf16.mxu0 0
      %1120 = vmatmul.mubr.bf16.gmra.mxu0 %v950
      %v1121 = vpop.f32.mrf.mxu0
      %v1122 = vadd.f32 %v989, %v1121
      %v1123 = vpop.f32.mrf.mxu0
      %v1124 = vpop.f32.mrf.mxu0
      %v1125 = vadd.f32 %v989, %v1124
      %v1126 = vpop.f32.mrf.mxu0
      %1127 = vmatprep.mubr.bf16.mxu0 0
      %1128 = vmatmul.mubr.bf16.gmra.mxu0 %v951
      %v1129 = vpop.f32.mrf.mxu0
      %v1130 = vadd.f32 %v989, %v1129
      %v1131 = vpop.f32.mrf.mxu0
      %v1132 = vpop.f32.mrf.mxu0
      %v1133 = vadd.f32 %v989, %v1132
      %v1134 = vpop.f32.mrf.mxu0
      %1135 = vdwg.mxu0
      %v1136 = vunpack.c.l.bf16 %v969
      %v1137 = vunpack.c.l.bf16 %v970
      %v1138 = vunpack.c.l.bf16 %v971
      %v1139 = vunpack.c.l.bf16 %v972
      %v1140 = vunpack.c.l.bf16 %v973
      %v1141 = vunpack.c.l.bf16 %v974
      %v1142 = vunpack.c.l.bf16 %v975
      %v1143 = vunpack.c.l.bf16 %v976
      %v1144 = vunpack.c.l.bf16 %v977
      %v1145 = vunpack.c.l.bf16 %v978
      %v1146 = vunpack.c.l.bf16 %v979
      %v1147 = vunpack.c.l.bf16 %v980
      %v1148 = vunpack.c.l.bf16 %v981
      %v1149 = vunpack.c.l.bf16 %v982
      %v1150 = vunpack.c.l.bf16 %v983
      %v1151 = vunpack.c.l.bf16 %v984
      %v1152 = vlaneseq
      %v1153 = vshrl.u32 %v1152, 7
      %v1154 = vsub.s32 0, %v1153
      %v1155 = vrot.slane %v1136, %v1154
      %v1156 = vlaneseq
      %v1157 = vshrl.u32 %v1156, 7
      %v1158 = vsub.s32 0, %v1157
      %v1159 = vrot.slane %v1137, %v1158
      %v1160 = vlaneseq
      %v1161 = vshrl.u32 %v1160, 7
      %v1162 = vsub.s32 0, %v1161
      %v1163 = vrot.slane %v1138, %v1162
      %v1164 = vlaneseq
      %v1165 = vshrl.u32 %v1164, 7
      %v1166 = vsub.s32 0, %v1165
      %v1167 = vrot.slane %v1139, %v1166
      %v1168 = vlaneseq
      %v1169 = vshrl.u32 %v1168, 7
      %v1170 = vsub.s32 0, %v1169
      %v1171 = vrot.slane %v1140, %v1170
      %v1172 = vlaneseq
      %v1173 = vshrl.u32 %v1172, 7
      %v1174 = vsub.s32 0, %v1173
      %v1175 = vrot.slane %v1141, %v1174
      %v1176 = vlaneseq
      %v1177 = vshrl.u32 %v1176, 7
      %v1178 = vsub.s32 0, %v1177
      %v1179 = vrot.slane %v1142, %v1178
      %v1180 = vlaneseq
      %v1181 = vshrl.u32 %v1180, 7
      %v1182 = vsub.s32 0, %v1181
      %v1183 = vrot.slane %v1143, %v1182
      %v1184 = vlaneseq
      %v1185 = vshrl.u32 %v1184, 7
      %v1186 = vsub.s32 0, %v1185
      %v1187 = vrot.slane %v1144, %v1186
      %v1188 = vlaneseq
      %v1189 = vshrl.u32 %v1188, 7
      %v1190 = vsub.s32 0, %v1189
      %v1191 = vrot.slane %v1145, %v1190
      %v1192 = vlaneseq
      %v1193 = vshrl.u32 %v1192, 7
      %v1194 = vsub.s32 0, %v1193
      %v1195 = vrot.slane %v1146, %v1194
      %v1196 = vlaneseq
      %v1197 = vshrl.u32 %v1196, 7
      %v1198 = vsub.s32 0, %v1197
      %v1199 = vrot.slane %v1147, %v1198
      %v1200 = vlaneseq
      %v1201 = vshrl.u32 %v1200, 7
      %v1202 = vsub.s32 0, %v1201
      %v1203 = vrot.slane %v1148, %v1202
      %v1204 = vlaneseq
      %v1205 = vshrl.u32 %v1204, 7
      %v1206 = vsub.s32 0, %v1205
      %v1207 = vrot.slane %v1149, %v1206
      %v1208 = vlaneseq
      %v1209 = vshrl.u32 %v1208, 7
      %v1210 = vsub.s32 0, %v1209
      %v1211 = vrot.slane %v1150, %v1210
      %v1212 = vlaneseq
      %v1213 = vshrl.u32 %v1212, 7
      %v1214 = vsub.s32 0, %v1213
      %v1215 = vrot.slane %v1151, %v1214
      %v1216 = vmul.f32 %v1155, %v1074
      %v1217 = vmul.f32 %v1159, %v1077
      %v1218 = vmul.f32 %v1163, %v1082
      %v1219 = vmul.f32 %v1167, %v1085
      %v1220 = vmul.f32 %v1171, %v1090
      %v1221 = vmul.f32 %v1175, %v1093
      %v1222 = vmul.f32 %v1179, %v1098
      %v1223 = vmul.f32 %v1183, %v1101
      %v1224 = vmul.f32 %v1187, %v1106
      %v1225 = vmul.f32 %v1191, %v1109
      %v1226 = vmul.f32 %v1195, %v1114
      %v1227 = vmul.f32 %v1199, %v1117
      %v1228 = vmul.f32 %v1203, %v1122
      %v1229 = vmul.f32 %v1207, %v1125
      %v1230 = vmul.f32 %v1211, %v1130
      %v1231 = vmul.f32 %v1215, %v1133
      %vm1232 = vcmask 31744
      %1233 = vst.msk [vmem:[%s396] sm:$0xff] %vm1232, %v1216
      %1234 = vst.msk [vmem:[%s396 + $0x8] sm:$0xff] %vm1232, %v1217
      %1235 = vst.msk [vmem:[%s396 + $0x10] sm:$0xff] %vm1232, %v1218
      %1236 = vst.msk [vmem:[%s396 + $0x18] sm:$0xff] %vm1232, %v1219
      %1237 = vst.msk [vmem:[%s396 + $0x20] sm:$0xff] %vm1232, %v1220
      %1238 = vst.msk [vmem:[%s396 + $0x28] sm:$0xff] %vm1232, %v1221
      %1239 = vst.msk [vmem:[%s396 + $0x30] sm:$0xff] %vm1232, %v1222
      %1240 = vst.msk [vmem:[%s396 + $0x38] sm:$0xff] %vm1232, %v1223
      %1241 = vst.msk [vmem:[%s396 + $0x40] sm:$0xff] %vm1232, %v1224
      %1242 = vst.msk [vmem:[%s396 + $0x48] sm:$0xff] %vm1232, %v1225
      %1243 = vst.msk [vmem:[%s396 + $0x50] sm:$0xff] %vm1232, %v1226
      %1244 = vst.msk [vmem:[%s396 + $0x58] sm:$0xff] %vm1232, %v1227
      %1245 = vst.msk [vmem:[%s396 + $0x60] sm:$0xff] %vm1232, %v1228
      %1246 = vst.msk [vmem:[%s396 + $0x68] sm:$0xff] %vm1232, %v1229
      %1247 = vst.msk [vmem:[%s396 + $0x70] sm:$0xff] %vm1232, %v1230
      %1248 = vst.msk [vmem:[%s396 + $0x78] sm:$0xff] %vm1232, %v1231
      %s1249 = smul.u32 16, %s21
      %p1250 = scmp.lt.s32.totalorder %s1249, 127
      %s1251 = scalar_select %p1250, %s1249, 127
      %s1252 = smul.addr %s1251, 8
      %s1253 = scalar_lea.vmem %s10, %s1252
      // Predicated region
      $region61: #{tpu_custom_call.1} parent=59 // pred_check
        %p1254 = pneg %p264
      $region62: #{tpu_custom_call.1} parent=59 // pred_check_branch
        %1256 = sbr.rel (%p1254) target = $region64
      $region63: #{tpu_custom_call.1} parent=59 // pred_region
        %s1257 = smul.u32 16, %s21
      $region64: #{tpu_custom_call.1} parent=59 // pred_fallthru
        _
    $region60: #{tpu_custom_call.1} parent=5 // pred_fallthru
      _
    %p1258 = scmp.le.s32.totalorder 2, %s16
    // Predicated region
    $region65: #{tpu_custom_call.1} parent=5 // pred_check
      %p1259 = pneg %p1258
    $region66: #{tpu_custom_call.1} parent=5 // pred_check_branch
      %1261 = sbr.rel (%p1259) target = $region68
    $region67: #{tpu_custom_call.1} parent=5 // pred_region
      %s1262 = ssub.s32 %s16, 2
      // Predicated region
      $region69: #{tpu_custom_call.1} parent=67 // pred_check
        %p1263 = pneg %p270
      $region70: #{tpu_custom_call.1} parent=67 // pred_check_branch
        %1265 = sbr.rel (%p1263) target = $region72
      $region71: #{tpu_custom_call.1} parent=67 // pred_region
        %s1266 = smul.u32 16, %s22
        %p1267 = scmp.lt.s32.totalorder %s1266, 127
        %s1268 = scalar_select %p1267, %s1266, 127
        %s1269 = smul.addr %s1268, 8
        %s1270 = scalar_lea.vmem %s10, %s1269
      $region72: #{tpu_custom_call.1} parent=67 // pred_fallthru
        _
    $region68: #{tpu_custom_call.1} parent=5 // pred_fallthru
      _
  $region6: #{tpu_custom_call.1} parent=0 // loop_footer
    %s20 = sadd.s32 1, %s16
  $region7: #{tpu_custom_call.1} parent=0 // loop_footer_branch
    %15 = sbr.rel target = $region3
  $region8: #{tpu_custom_call.1} parent=0 // loop_exit
    _

// kernel: tpu_custom_call.1
$region0: #{tpu_custom_call.1}
  #allocation0 [shape = 'u32[]', space=smem, size = 0x4, offset = 0x4, fixed_abs, tag = 'smem constant byte address 0x4 - core index']
  #allocation1 [shape = 'u32[144,128]{1,0:T(1,128)}', space=vmem, size = 0x12000, scoped, tag = 'internal scratch']
  %s0 = inlined_call_operand.vmem [shape: f32[8,128], index: 0, kind: input, shape index: {}]
  %s1 = inlined_call_operand.vmem [shape: bf16[128,128], index: 1, kind: input, shape index: {}]
  %s2 = inlined_call_operand.vmem [shape: f32[1,128], index: 2, kind: input, shape index: {}]
  %s3 = inlined_call_operand.vmem [shape: bf16[128,1,128], index: 3, kind: input, shape index: {}]
  %s4 = inlined_call_operand.vmem [shape: bf16[128,128], index: 4, kind: input, shape index: {}]
  %s5 = inlined_call_operand.vmem [shape: f32[1,128], index: 5, kind: input, shape index: {}]
  %s6 = inlined_call_operand.vmem [shape: bf16[128,1,128], index: 6, kind: input, shape index: {}]
  %s7 = inlined_call_operand.vmem [shape: bf16[128,128], index: 7, kind: input, shape index: {}]
  %s8 = inlined_call_operand.vmem [shape: f32[1,128], index: 8, kind: input, shape index: {}]
  %s9 = inlined_call_operand.vmem [shape: bf16[128,1,128], index: 9, kind: input, shape index: {}]
  %s10 = inlined_call_operand.vmem [shape: f32[128,8,4], index: 10, kind: output, shape index: {}]
  %s11 = sld [smem:[#allocation0]]
  $region73: #{tpu_custom_call.1} parent=0
    _
  %s13 = ssub.s32 1, %s11
  %s14 = scalar_select 0, %s13, %s11
  loop: start=0, step=1, limit=10
  $region2: #{tpu_custom_call.1} parent=0 // loop_pre_header
    _
  $region3: #{tpu_custom_call.1} parent=0 // loop_header
    %s16 = sphi 0, %s20
    %p17 = scmp.ge.s32.totalorder %s16, 10
    %s24 = sphi 0, %s24
    %s26 = sphi 0, %s24
    %s27 = sphi 0, %s26
    %s41 = sphi 0, %s27
    %s45 = sphi 0, %s45
    %s47 = sphi 0, %s45
    %s48 = sphi 0, %s47
    %s62 = sphi 0, %s48
    %s66 = sphi 0, %s66
    %s68 = sphi 0, %s66
    %s69 = sphi 0, %s68
    %s83 = sphi 0, %s69
    %s89 = sphi 0, %s91
    %s92 = sphi 0, %s89
    %s93 = sphi 0, %s92
    %s109 = sphi 0, %s93
    %s113 = sphi 0, %s113
    %s115 = sphi 0, %s113
    %s116 = sphi 0, %s115
    %s130 = sphi 0, %s116
    %s134 = sphi 0, %s134
    %s136 = sphi 0, %s134
    %s137 = sphi 0, %s136
    %s151 = sphi 0, %s137
    %s157 = sphi 0, %s159
    %s160 = sphi 0, %s157
    %s161 = sphi 0, %s160
    %s177 = sphi 0, %s161
    %s181 = sphi 0, %s181
    %s183 = sphi 0, %s181
    %s184 = sphi 0, %s183
    %s198 = sphi 0, %s184
    %s202 = sphi 0, %s202
    %s204 = sphi 0, %s202
    %s205 = sphi 0, %s204
    %s219 = sphi 0, %s205
    %s225 = sphi 0, %s227
    %s228 = sphi 0, %s225
    %s229 = sphi 0, %s228
    %s245 = sphi 0, %s229
    %s251 = sphi 0, %s253
    %s254 = sphi 0, %s251
    %s255 = sphi 0, %s254
    %s271 = sphi 0, %s255
  $region4: #{tpu_custom_call.1} parent=0 // loop_header_branch
    %19 = sbr.rel (%p17) target = $region8
  $region5: #{tpu_custom_call.1} parent=0 // loop_body
    %s21 = ssub.s32 %s16, 1
    %s22 = ssub.s32 %s16, 2
    %s23 = sadd.s32 %s16, 1
    %s25 = sadd.s32 %s24, 1
    %p28 = scmp.eq.s32.totalorder %s16, 7
    %p29 = scmp.ne.s32.totalorder %s24, %s26
    %p30 = scmp.eq.s32.totalorder %s16, 0
    %p31 = por %p29, %p30
    %p32 = scmp.ne.s32.totalorder %s24, %s26
    %p33 = scmp.eq.s32.totalorder %s21, 7
    %p34 = por %p32, %p33
    %p35 = scmp.ne.s32.totalorder %s26, %s27
    %p36 = scmp.eq.s32.totalorder %s21, 0
    %p37 = por %p35, %p36
    %p38 = scmp.ne.s32.totalorder %s26, %s27
    %p39 = scmp.eq.s32.totalorder %s22, 7
    %p40 = por %p38, %p39
    %p42 = scmp.ne.s32.totalorder %s27, %s41
    %p43 = scmp.eq.s32.totalorder %s22, 0
    %p44 = por %p42, %p43
    %s46 = sadd.s32 %s45, 1
    %p49 = scmp.eq.s32.totalorder %s16, 7
    %p50 = scmp.ne.s32.totalorder %s45, %s47
    %p51 = scmp.eq.s32.totalorder %s16, 0
    %p52 = por %p50, %p51
    %p53 = scmp.ne.s32.totalorder %s45, %s47
    %p54 = scmp.eq.s32.totalorder %s21, 7
    %p55 = por %p53, %p54
    %p56 = scmp.ne.s32.totalorder %s47, %s48
    %p57 = scmp.eq.s32.totalorder %s21, 0
    %p58 = por %p56, %p57
    %p59 = scmp.ne.s32.totalorder %s47, %s48
    %p60 = scmp.eq.s32.totalorder %s22, 7
    %p61 = por %p59, %p60
    %p63 = scmp.ne.s32.totalorder %s48, %s62
    %p64 = scmp.eq.s32.totalorder %s22, 0
    %p65 = por %p63, %p64
    %s67 = sadd.s32 %s66, 1
    %p70 = scmp.eq.s32.totalorder %s16, 7
    %p71 = scmp.ne.s32.totalorder %s66, %s68
    %p72 = scmp.eq.s32.totalorder %s16, 0
    %p73 = por %p71, %p72
    %p74 = scmp.ne.s32.totalorder %s66, %s68
    %p75 = scmp.eq.s32.totalorder %s21, 7
    %p76 = por %p74, %p75
    %p77 = scmp.ne.s32.totalorder %s68, %s69
    %p78 = scmp.eq.s32.totalorder %s21, 0
    %p79 = por %p77, %p78
    %p80 = scmp.ne.s32.totalorder %s68, %s69
    %p81 = scmp.eq.s32.totalorder %s22, 7
    %p82 = por %p80, %p81
    %p84 = scmp.ne.s32.totalorder %s69, %s83
    %p85 = scmp.eq.s32.totalorder %s22, 0
    %p86 = por %p84, %p85
    %s87 = ssub.s32 %s16, %s23
    %p88 = scmp.eq.s32.totalorder %s87, 0
    %s90 = sadd.s32 %s89, 1
    %s91 = scalar_select %p88, %s89, %s90
    %p94 = pneg %p88
    %p95 = scmp.eq.s32.totalorder %s16, 7
    %p96 = por %p94, %p95
    %p97 = scmp.ne.s32.totalorder %s89, %s92
    %p98 = scmp.eq.s32.totalorder %s16, 0
    %p99 = por %p97, %p98
    %p100 = scmp.ne.s32.totalorder %s89, %s92
    %p101 = scmp.eq.s32.totalorder %s21, 7
    %p102 = por %p100, %p101
    %p103 = scmp.ne.s32.totalorder %s92, %s93
    %p104 = scmp.eq.s32.totalorder %s21, 0
    %p105 = por %p103, %p104
    %p106 = scmp.ne.s32.totalorder %s92, %s93
    %p107 = scmp.eq.s32.totalorder %s22, 7
    %p108 = por %p106, %p107
    %p110 = scmp.ne.s32.totalorder %s93, %s109
    %p111 = scmp.eq.s32.totalorder %s22, 0
    %p112 = por %p110, %p111
    %s114 = sadd.s32 %s113, 1
    %p117 = scmp.eq.s32.totalorder %s16, 7
    %p118 = scmp.ne.s32.totalorder %s113, %s115
    %p119 = scmp.eq.s32.totalorder %s16, 0
    %p120 = por %p118, %p119
    %p121 = scmp.ne.s32.totalorder %s113, %s115
    %p122 = scmp.eq.s32.totalorder %s21, 7
    %p123 = por %p121, %p122
    %p124 = scmp.ne.s32.totalorder %s115, %s116
    %p125 = scmp.eq.s32.totalorder %s21, 0
    %p126 = por %p124, %p125
    %p127 = scmp.ne.s32.totalorder %s115, %s116
    %p128 = scmp.eq.s32.totalorder %s22, 7
    %p129 = por %p127, %p128
    %p131 = scmp.ne.s32.totalorder %s116, %s130
    %p132 = scmp.eq.s32.totalorder %s22, 0
    %p133 = por %p131, %p132
    %s135 = sadd.s32 %s134, 1
    %p138 = scmp.eq.s32.totalorder %s16, 7
    %p139 = scmp.ne.s32.totalorder %s134, %s136
    %p140 = scmp.eq.s32.totalorder %s16, 0
    %p141 = por %p139, %p140
    %p142 = scmp.ne.s32.totalorder %s134, %s136
    %p143 = scmp.eq.s32.totalorder %s21, 7
    %p144 = por %p142, %p143
    %p145 = scmp.ne.s32.totalorder %s136, %s137
    %p146 = scmp.eq.s32.totalorder %s21, 0
    %p147 = por %p145, %p146
    %p148 = scmp.ne.s32.totalorder %s136, %s137
    %p149 = scmp.eq.s32.totalorder %s22, 7
    %p150 = por %p148, %p149
    %p152 = scmp.ne.s32.totalorder %s137, %s151
    %p153 = scmp.eq.s32.totalorder %s22, 0
    %p154 = por %p152, %p153
    %s155 = ssub.s32 %s16, %s23
    %p156 = scmp.eq.s32.totalorder %s155, 0
    %s158 = sadd.s32 %s157, 1
    %s159 = scalar_select %p156, %s157, %s158
    %p162 = pneg %p156
    %p163 = scmp.eq.s32.totalorder %s16, 7
    %p164 = por %p162, %p163
    %p165 = scmp.ne.s32.totalorder %s157, %s160
    %p166 = scmp.eq.s32.totalorder %s16, 0
    %p167 = por %p165, %p166
    %p168 = scmp.ne.s32.totalorder %s157, %s160
    %p169 = scmp.eq.s32.totalorder %s21, 7
    %p170 = por %p168, %p169
    %p171 = scmp.ne.s32.totalorder %s160, %s161
    %p172 = scmp.eq.s32.totalorder %s21, 0
    %p173 = por %p171, %p172
    %p174 = scmp.ne.s32.totalorder %s160, %s161
    %p175 = scmp.eq.s32.totalorder %s22, 7
    %p176 = por %p174, %p175
    %p178 = scmp.ne.s32.totalorder %s161, %s177
    %p179 = scmp.eq.s32.totalorder %s22, 0
    %p180 = por %p178, %p179
    %s182 = sadd.s32 %s181, 1
    %p185 = scmp.eq.s32.totalorder %s16, 7
    %p186 = scmp.ne.s32.totalorder %s181, %s183
    %p187 = scmp.eq.s32.totalorder %s16, 0
    %p188 = por %p186, %p187
    %p189 = scmp.ne.s32.totalorder %s181, %s183
    %p190 = scmp.eq.s32.totalorder %s21, 7
    %p191 = por %p189, %p190
    %p192 = scmp.ne.s32.totalorder %s183, %s184
    %p193 = scmp.eq.s32.totalorder %s21, 0
    %p194 = por %p192, %p193
    %p195 = scmp.ne.s32.totalorder %s183, %s184
    %p196 = scmp.eq.s32.totalorder %s22, 7
    %p197 = por %p195, %p196
    %p199 = scmp.ne.s32.totalorder %s184, %s198
    %p200 = scmp.eq.s32.totalorder %s22, 0
    %p201 = por %p199, %p200
    %s203 = sadd.s32 %s202, 1
    %p206 = scmp.eq.s32.totalorder %s16, 7
    %p207 = scmp.ne.s32.totalorder %s202, %s204
    %p208 = scmp.eq.s32.totalorder %s16, 0
    %p209 = por %p207, %p208
    %p210 = scmp.ne.s32.totalorder %s202, %s204
    %p211 = scmp.eq.s32.totalorder %s21, 7
    %p212 = por %p210, %p211
    %p213 = scmp.ne.s32.totalorder %s204, %s205
    %p214 = scmp.eq.s32.totalorder %s21, 0
    %p215 = por %p213, %p214
    %p216 = scmp.ne.s32.totalorder %s204, %s205
    %p217 = scmp.eq.s32.totalorder %s22, 7
    %p218 = por %p216, %p217
    %p220 = scmp.ne.s32.totalorder %s205, %s219
    %p221 = scmp.eq.s32.totalorder %s22, 0
    %p222 = por %p220, %p221
    %s223 = ssub.s32 %s16, %s23
    %p224 = scmp.eq.s32.totalorder %s223, 0
    %s226 = sadd.s32 %s225, 1
    %s227 = scalar_select %p224, %s225, %s226
    %p230 = pneg %p224
    %p231 = scmp.eq.s32.totalorder %s16, 7
    %p232 = por %p230, %p231
    %p233 = scmp.ne.s32.totalorder %s225, %s228
    %p234 = scmp.eq.s32.totalorder %s16, 0
    %p235 = por %p233, %p234
    %p236 = scmp.ne.s32.totalorder %s225, %s228
    %p237 = scmp.eq.s32.totalorder %s21, 7
    %p238 = por %p236, %p237
    %p239 = scmp.ne.s32.totalorder %s228, %s229
    %p240 = scmp.eq.s32.totalorder %s21, 0
    %p241 = por %p239, %p240
    %p242 = scmp.ne.s32.totalorder %s228, %s229
    %p243 = scmp.eq.s32.totalorder %s22, 7
    %p244 = por %p242, %p243
    %p246 = scmp.ne.s32.totalorder %s229, %s245
    %p247 = scmp.eq.s32.totalorder %s22, 0
    %p248 = por %p246, %p247
    %s249 = ssub.s32 %s16, %s23
    %p250 = scmp.eq.s32.totalorder %s249, 0
    %s252 = sadd.s32 %s251, 1
    %s253 = scalar_select %p250, %s251, %s252
    %p256 = pneg %p250
    %p257 = scmp.eq.s32.totalorder %s16, 7
    %p258 = por %p256, %p257
    %p259 = scmp.ne.s32.totalorder %s251, %s254
    %p260 = scmp.eq.s32.totalorder %s16, 0
    %p261 = por %p259, %p260
    %p262 = scmp.ne.s32.totalorder %s251, %s254
    %p263 = scmp.eq.s32.totalorder %s21, 7
    %p264 = por %p262, %p263
    %p265 = scmp.ne.s32.totalorder %s254, %s255
    %p266 = scmp.eq.s32.totalorder %s21, 0
    %p267 = por %p265, %p266
    %p268 = scmp.ne.s32.totalorder %s254, %s255
    %p269 = scmp.eq.s32.totalorder %s22, 7
    %p270 = por %p268, %p269
    %p272 = scmp.ne.s32.totalorder %s255, %s271
    %p273 = scmp.eq.s32.totalorder %s22, 0
    %p274 = por %p272, %p273
    %p275 = scmp.le.s32.totalorder 1, %s16
    %p276 = scmp.lt.s32.totalorder %s16, 9
    %p277 = pnand %p275, %p276
    %p278 = pneg %p277
    // Predicated region
    $region9: #{tpu_custom_call.1} parent=5 // pred_check
      _
    $region10: #{tpu_custom_call.1} parent=5 // pred_check_branch
      %280 = sbr.rel (%p277) target = $region12
    $region11: #{tpu_custom_call.1} parent=5 // pred_region
      %s281 = ssub.s32 %s16, 1
      // Predicated region
      $region13: #{tpu_custom_call.1} parent=11 // pred_check
        %p282 = pneg %p37
      $region14: #{tpu_custom_call.1} parent=11 // pred_check_branch
        %284 = sbr.rel (%p282) target = $region16
      $region15: #{tpu_custom_call.1} parent=11 // pred_region
        _
      $region16: #{tpu_custom_call.1} parent=11 // pred_fallthru
        _
      // Predicated region
      $region17: #{tpu_custom_call.1} parent=11 // pred_check
        %p285 = pneg %p58
      $region18: #{tpu_custom_call.1} parent=11 // pred_check_branch
        %287 = sbr.rel (%p285) target = $region20
      $region19: #{tpu_custom_call.1} parent=11 // pred_region
        _
      $region20: #{tpu_custom_call.1} parent=11 // pred_fallthru
        _
      // Predicated region
      $region21: #{tpu_custom_call.1} parent=11 // pred_check
        %p288 = pneg %p79
      $region22: #{tpu_custom_call.1} parent=11 // pred_check_branch
        %290 = sbr.rel (%p288) target = $region24
      $region23: #{tpu_custom_call.1} parent=11 // pred_region
        _
      $region24: #{tpu_custom_call.1} parent=11 // pred_fallthru
        _
      // Predicated region
      $region25: #{tpu_custom_call.1} parent=11 // pred_check
        %p291 = pneg %p126
      $region26: #{tpu_custom_call.1} parent=11 // pred_check_branch
        %293 = sbr.rel (%p291) target = $region28
      $region27: #{tpu_custom_call.1} parent=11 // pred_region
        _
      $region28: #{tpu_custom_call.1} parent=11 // pred_fallthru
        _
      // Predicated region
      $region29: #{tpu_custom_call.1} parent=11 // pred_check
        %p294 = pneg %p147
      $region30: #{tpu_custom_call.1} parent=11 // pred_check_branch
        %296 = sbr.rel (%p294) target = $region32
      $region31: #{tpu_custom_call.1} parent=11 // pred_region
        _
      $region32: #{tpu_custom_call.1} parent=11 // pred_fallthru
        _
      // Predicated region
      $region33: #{tpu_custom_call.1} parent=11 // pred_check
        %p297 = pneg %p194
      $region34: #{tpu_custom_call.1} parent=11 // pred_check_branch
        %299 = sbr.rel (%p297) target = $region36
      $region35: #{tpu_custom_call.1} parent=11 // pred_region
        _
      $region36: #{tpu_custom_call.1} parent=11 // pred_fallthru
        _
      // Predicated region
      $region37: #{tpu_custom_call.1} parent=11 // pred_check
        %p300 = pneg %p215
      $region38: #{tpu_custom_call.1} parent=11 // pred_check_branch
        %302 = sbr.rel (%p300) target = $region40
      $region39: #{tpu_custom_call.1} parent=11 // pred_region
        _
      $region40: #{tpu_custom_call.1} parent=11 // pred_fallthru
        _
    $region12: #{tpu_custom_call.1} parent=5 // pred_fallthru
      _
    %p303 = scmp.lt.s32.totalorder %s16, 8
    // Predicated region
    $region41: #{tpu_custom_call.1} parent=5 // pred_check
      %p304 = pneg %p303
    $region42: #{tpu_custom_call.1} parent=5 // pred_check_branch
      %306 = sbr.rel (%p304) target = $region44
    $region43: #{tpu_custom_call.1} parent=5 // pred_region
      // Predicated region
      $region45: #{tpu_custom_call.1} parent=43 // pred_check
        %p307 = pneg %p99
      $region46: #{tpu_custom_call.1} parent=43 // pred_check_branch
        %309 = sbr.rel (%p307) target = $region48
      $region47: #{tpu_custom_call.1} parent=43 // pred_region
        %s310 = smul.u32 16, %s16
        %p311 = scmp.lt.s32.totalorder %s310, 127
        %s312 = scalar_select %p311, %s310, 127
        %s313 = scalar_lea.vmem %s3, %s312
        %s314 = smul.u32 16, %s16
      $region48: #{tpu_custom_call.1} parent=43 // pred_fallthru
        _
      // Predicated region
      $region49: #{tpu_custom_call.1} parent=43 // pred_check
        %p315 = pneg %p167
      $region50: #{tpu_custom_call.1} parent=43 // pred_check_branch
        %317 = sbr.rel (%p315) target = $region52
      $region51: #{tpu_custom_call.1} parent=43 // pred_region
        %s318 = smul.u32 16, %s16
        %p319 = scmp.lt.s32.totalorder %s318, 127
        %s320 = scalar_select %p319, %s318, 127
        %s321 = scalar_lea.vmem %s6, %s320
        %s322 = smul.u32 16, %s16
      $region52: #{tpu_custom_call.1} parent=43 // pred_fallthru
        _
      // Predicated region
      $region53: #{tpu_custom_call.1} parent=43 // pred_check
        %p323 = pneg %p235
      $region54: #{tpu_custom_call.1} parent=43 // pred_check_branch
        %325 = sbr.rel (%p323) target = $region56
      $region55: #{tpu_custom_call.1} parent=43 // pred_region
        %s326 = smul.u32 16, %s16
        %p327 = scmp.lt.s32.totalorder %s326, 127
        %s328 = scalar_select %p327, %s326, 127
        %s329 = scalar_lea.vmem %s9, %s328
        %s330 = smul.u32 16, %s16
      $region56: #{tpu_custom_call.1} parent=43 // pred_fallthru
        _
    $region44: #{tpu_custom_call.1} parent=5 // pred_fallthru
      _
    %p331 = scmp.le.s32.totalorder 1, %s16
    %p332 = scmp.lt.s32.totalorder %s16, 9
    %p333 = pnand %p331, %p332
    %p334 = pneg %p333
    // Predicated region
    $region57: #{tpu_custom_call.1} parent=5 // pred_check
      _
    $region58: #{tpu_custom_call.1} parent=5 // pred_check_branch
      %336 = sbr.rel (%p333) target = $region60
    $region59: #{tpu_custom_call.1} parent=5 // pred_region
      %s337 = ssub.s32 %s16, 1
      %p338 = pneg %p37
      %p339 = pneg %p34
      %p340 = pneg %p58
      %p341 = pneg %p55
      %p342 = pneg %p79
      %p343 = pneg %p76
      %s344 = smul.u32 16, %s21
      %p345 = scmp.lt.s32.totalorder %s344, 127
      %s346 = scalar_select %p345, %s344, 127
      %s347 = scalar_lea.vmem %s3, %s346
      %p348 = pneg %p105
      %p349 = pneg %p102
      %p350 = pneg %p126
      %p351 = pneg %p123
      %p352 = pneg %p147
      %p353 = pneg %p144
      %s354 = smul.u32 16, %s21
      %p355 = scmp.lt.s32.totalorder %s354, 127
      %s356 = scalar_select %p355, %s354, 127
      %s357 = scalar_lea.vmem %s6, %s356
      %p358 = pneg %p173
      %p359 = pneg %p170
      %p360 = pneg %p194
      %p361 = pneg %p191
      %p362 = pneg %p215
      %p363 = pneg %p212
      %s364 = smul.u32 16, %s21
      %p365 = scmp.lt.s32.totalorder %s364, 127
      %s366 = scalar_select %p365, %s364, 127
      %s367 = scalar_lea.vmem %s9, %s366
      %p368 = pneg %p241
      %p369 = pneg %p238
      %p370 = pneg %p267
      %p371 = pneg %p264
      %s372 = smul.u32 16, %s21
      %p373 = scmp.lt.s32.totalorder %s372, 127
      %s374 = scalar_select %p373, %s372, 127
      %s375 = smul.addr %s374, 8
      %s376 = scalar_lea.vmem %s10, %s375
      %s377 = smul.u32 16, %s21
      %p378 = scmp.lt.s32.totalorder %s377, 127
      %s379 = scalar_select %p378, %s377, 127
      %s380 = scalar_lea.vmem %s3, %s379
      %s381 = smul.u32 16, %s21
      %s382 = smul.u32 16, %s21
      %p383 = scmp.lt.s32.totalorder %s382, 127
      %s384 = scalar_select %p383, %s382, 127
      %s385 = scalar_lea.vmem %s6, %s384
      %s386 = smul.u32 16, %s21
      %s387 = smul.u32 16, %s21
      %p388 = scmp.lt.s32.totalorder %s387, 127
      %s389 = scalar_select %p388, %s387, 127
      %s390 = scalar_lea.vmem %s9, %s389
      %s391 = smul.u32 16, %s21
      %s392 = smul.u32 16, %s21
      %p393 = scmp.lt.s32.totalorder %s392, 127
      %s394 = scalar_select %p393, %s392, 127
      %s395 = smul.addr %s394, 8
      %s396 = scalar_lea.vmem %s10, %s395
      %s397 = smul.u32 16, %s21
      %v399 = vld [vmem:[%s1] sm:$0xf]
      %v400 = vld [vmem:[%s1 + $0x4] sm:$0xf]
      %v401 = vld [vmem:[%s1 + $0x8] sm:$0xf]
      %v402 = vld [vmem:[%s1 + $0xc] sm:$0xf]
      %v403 = vld [vmem:[%s1 + $0x10] sm:$0xf]
      %v404 = vld [vmem:[%s1 + $0x14] sm:$0xf]
      %v405 = vld [vmem:[%s1 + $0x18] sm:$0xf]
      %v406 = vld [vmem:[%s1 + $0x1c] sm:$0xf]
      %v407 = vld [vmem:[%s1 + $0x20] sm:$0xf]
      %v408 = vld [vmem:[%s1 + $0x24] sm:$0xf]
      %v409 = vld [vmem:[%s1 + $0x28] sm:$0xf]
      %v410 = vld [vmem:[%s1 + $0x2c] sm:$0xf]
      %v411 = vld [vmem:[%s1 + $0x30] sm:$0xf]
      %v412 = vld [vmem:[%s1 + $0x34] sm:$0xf]
      %v413 = vld [vmem:[%s1 + $0x38] sm:$0xf]
      %v414 = vld [vmem:[%s1 + $0x3c] sm:$0xf]
      %v415 = vld [vmem:[%s2] sm:$0x1]
      %v416 = vld [vmem:[%s380] sm:$0x1]
      %v417 = vld [vmem:[%s380 + $0x1] sm:$0x1]
      %v418 = vld [vmem:[%s380 + $0x2] sm:$0x1]
      %v419 = vld [vmem:[%s380 + $0x3] sm:$0x1]
      %v420 = vld [vmem:[%s380 + $0x4] sm:$0x1]
      %v421 = vld [vmem:[%s380 + $0x5] sm:$0x1]
      %v422 = vld [vmem:[%s380 + $0x6] sm:$0x1]
      %v423 = vld [vmem:[%s380 + $0x7] sm:$0x1]
      %v424 = vld [vmem:[%s380 + $0x8] sm:$0x1]
      %v425 = vld [vmem:[%s380 + $0x9] sm:$0x1]
      %v426 = vld [vmem:[%s380 + $0xa] sm:$0x1]
      %v427 = vld [vmem:[%s380 + $0xb] sm:$0x1]
      %v428 = vld [vmem:[%s380 + $0xc] sm:$0x1]
      %v429 = vld [vmem:[%s380 + $0xd] sm:$0x1]
      %v430 = vld [vmem:[%s380 + $0xe] sm:$0x1]
      %v431 = vld [vmem:[%s380 + $0xf] sm:$0x1]
      %v432 = vld [vmem:[%s0] sm:$0xff]
      %v433 = vpack.c.bf16 %v432, %v432
      %v435 = vlaneseq
      %v436 = vshrl.u32 %v435, 7
      %v437 = vsub.s32 0, %v436
      %v438 = vrot.slane %v415, %v437
      %v456 = vunpack.c.l.b16 %v399
      %v457 = vunpack.c.l.b16 %v400
      %v458 = vunpack.c.l.b16 %v401
      %v459 = vunpack.c.l.b16 %v402
      %v460 = vunpack.c.l.b16 %v403
      %v461 = vunpack.c.l.b16 %v404
      %v462 = vunpack.c.l.b16 %v405
      %v463 = vunpack.c.l.b16 %v406
      %v464 = vunpack.c.l.b16 %v407
      %v465 = vunpack.c.l.b16 %v408
      %v466 = vunpack.c.l.b16 %v409
      %v467 = vunpack.c.l.b16 %v410
      %v468 = vunpack.c.l.b16 %v411
      %v469 = vunpack.c.l.b16 %v412
      %v470 = vunpack.c.l.b16 %v413
      %v471 = vunpack.c.l.b16 %v414
      %v472 = vpack.c.b16 %v457, %v456
      %v473 = vpack.c.b16 %v459, %v458
      %v474 = vpack.c.b16 %v461, %v460
      %v475 = vpack.c.b16 %v463, %v462
      %v476 = vpack.c.b16 %v465, %v464
      %v477 = vpack.c.b16 %v467, %v466
      %v478 = vpack.c.b16 %v469, %v468
      %v479 = vpack.c.b16 %v471, %v470
      %488 = vmatprep.subr.bf16.mxu0 0
      %489 = vmatpush1.bf16.msra.mxu0 %v479
      %490 = vmatprep.subr.bf16.mxu0 0
      %491 = vmatpush1.bf16.msra.mxu0 %v478
      %492 = vmatprep.subr.bf16.mxu0 0
      %493 = vmatpush1.bf16.msra.mxu0 %v477
      %494 = vmatprep.subr.bf16.mxu0 0
      %495 = vmatpush1.bf16.msra.mxu0 %v476
      %496 = vmatprep.subr.bf16.mxu0 0
      %497 = vmatpush1.bf16.msra.mxu0 %v475
      %498 = vmatprep.subr.bf16.mxu0 0
      %499 = vmatpush1.bf16.msra.mxu0 %v474
      %500 = vmatprep.subr.bf16.mxu0 0
      %501 = vmatpush1.bf16.msra.mxu0 %v473
      %502 = vmatprep.subr.bf16.mxu0 0
      %503 = vmatpush1.bf16.msra.mxu0 %v472
      %504 = vmatprep.subr.bf16.mxu0 0
      %505 = vmatpush2.bf16.msra.mxu0 0
      %506 = vmatprep.subr.bf16.mxu0 0
      %507 = vmatpush2.bf16.msra.mxu0 0
      %508 = vmatprep.subr.bf16.mxu0 0
      %509 = vmatpush2.bf16.msra.mxu0 0
      %510 = vmatprep.subr.bf16.mxu0 0
      %511 = vmatpush2.bf16.msra.mxu0 0
      %512 = vmatprep.subr.bf16.mxu0 0
      %513 = vmatpush2.bf16.msra.mxu0 0
      %514 = vmatprep.subr.bf16.mxu0 0
      %515 = vmatpush2.bf16.msra.mxu0 0
      %516 = vmatprep.subr.bf16.mxu0 0
      %517 = vmatpush2.bf16.msra.mxu0 0
      %518 = vmatprep.subr.bf16.mxu0 0
      %519 = vmatpush2.bf16.msra.mxu0 0
      %520 = vmatprep.mubr.bf16.mxu0 0
      %521 = vmatmul.mubr.bf16.gmra.mxu0 %v433
      %v522 = vpop.f32.mrf.mxu0
      %v523 = vadd.f32 %v438, %v522
      %v524 = vpop.f32.mrf.mxu0
      %v525 = vpop.f32.mrf.mxu0
      %v526 = vpop.f32.mrf.mxu0
      %527 = vdwg.mxu0
      %v528 = vunpack.c.l.bf16 %v416
      %v529 = vunpack.c.l.bf16 %v417
      %v530 = vunpack.c.l.bf16 %v418
      %v531 = vunpack.c.l.bf16 %v419
      %v532 = vunpack.c.l.bf16 %v420
      %v533 = vunpack.c.l.bf16 %v421
      %v534 = vunpack.c.l.bf16 %v422
      %v535 = vunpack.c.l.bf16 %v423
      %v536 = vunpack.c.l.bf16 %v424
      %v537 = vunpack.c.l.bf16 %v425
      %v538 = vunpack.c.l.bf16 %v426
      %v539 = vunpack.c.l.bf16 %v427
      %v540 = vunpack.c.l.bf16 %v428
      %v541 = vunpack.c.l.bf16 %v429
      %v542 = vunpack.c.l.bf16 %v430
      %v543 = vunpack.c.l.bf16 %v431
      %v544 = vlaneseq
      %v545 = vshrl.u32 %v544, 7
      %v546 = vsub.s32 0, %v545
      %v547 = vrot.slane %v528, %v546
      %v548 = vlaneseq
      %v549 = vshrl.u32 %v548, 7
      %v550 = vsub.s32 0, %v549
      %v551 = vrot.slane %v529, %v550
      %v552 = vlaneseq
      %v553 = vshrl.u32 %v552, 7
      %v554 = vsub.s32 0, %v553
      %v555 = vrot.slane %v530, %v554
      %v556 = vlaneseq
      %v557 = vshrl.u32 %v556, 7
      %v558 = vsub.s32 0, %v557
      %v559 = vrot.slane %v531, %v558
      %v560 = vlaneseq
      %v561 = vshrl.u32 %v560, 7
      %v562 = vsub.s32 0, %v561
      %v563 = vrot.slane %v532, %v562
      %v564 = vlaneseq
      %v565 = vshrl.u32 %v564, 7
      %v566 = vsub.s32 0, %v565
      %v567 = vrot.slane %v533, %v566
      %v568 = vlaneseq
      %v569 = vshrl.u32 %v568, 7
      %v570 = vsub.s32 0, %v569
      %v571 = vrot.slane %v534, %v570
      %v572 = vlaneseq
      %v573 = vshrl.u32 %v572, 7
      %v574 = vsub.s32 0, %v573
      %v575 = vrot.slane %v535, %v574
      %v576 = vlaneseq
      %v577 = vshrl.u32 %v576, 7
      %v578 = vsub.s32 0, %v577
      %v579 = vrot.slane %v536, %v578
      %v580 = vlaneseq
      %v581 = vshrl.u32 %v580, 7
      %v582 = vsub.s32 0, %v581
      %v583 = vrot.slane %v537, %v582
      %v584 = vlaneseq
      %v585 = vshrl.u32 %v584, 7
      %v586 = vsub.s32 0, %v585
      %v587 = vrot.slane %v538, %v586
      %v588 = vlaneseq
      %v589 = vshrl.u32 %v588, 7
      %v590 = vsub.s32 0, %v589
      %v591 = vrot.slane %v539, %v590
      %v592 = vlaneseq
      %v593 = vshrl.u32 %v592, 7
      %v594 = vsub.s32 0, %v593
      %v595 = vrot.slane %v540, %v594
      %v596 = vlaneseq
      %v597 = vshrl.u32 %v596, 7
      %v598 = vsub.s32 0, %v597
      %v599 = vrot.slane %v541, %v598
      %v600 = vlaneseq
      %v601 = vshrl.u32 %v600, 7
      %v602 = vsub.s32 0, %v601
      %v603 = vrot.slane %v542, %v602
      %v604 = vlaneseq
      %v605 = vshrl.u32 %v604, 7
      %v606 = vsub.s32 0, %v605
      %v607 = vrot.slane %v543, %v606
      %v608 = vmul.f32 %v547, %v523
      %v609 = vmul.f32 %v551, %v523
      %v610 = vmul.f32 %v555, %v523
      %v611 = vmul.f32 %v559, %v523
      %v612 = vmul.f32 %v563, %v523
      %v613 = vmul.f32 %v567, %v523
      %v614 = vmul.f32 %v571, %v523
      %v615 = vmul.f32 %v575, %v523
      %v616 = vmul.f32 %v579, %v523
      %v617 = vmul.f32 %v583, %v523
      %v618 = vmul.f32 %v587, %v523
      %v619 = vmul.f32 %v591, %v523
      %v620 = vmul.f32 %v595, %v523
      %v621 = vmul.f32 %v599, %v523
      %v622 = vmul.f32 %v603, %v523
      %v623 = vmul.f32 %v607, %v523
      %v624 = vmax.f32 %v608, 0.0
      %v625 = vmax.f32 %v609, 0.0
      %v626 = vmax.f32 %v610, 0.0
      %v627 = vmax.f32 %v611, 0.0
      %v628 = vmax.f32 %v612, 0.0
      %v629 = vmax.f32 %v613, 0.0
      %v630 = vmax.f32 %v614, 0.0
      %v631 = vmax.f32 %v615, 0.0
      %v632 = vmax.f32 %v616, 0.0
      %v633 = vmax.f32 %v617, 0.0
      %v634 = vmax.f32 %v618, 0.0
      %v635 = vmax.f32 %v619, 0.0
      %v636 = vmax.f32 %v620, 0.0
      %v637 = vmax.f32 %v621, 0.0
      %v638 = vmax.f32 %v622, 0.0
      %v639 = vmax.f32 %v623, 0.0
      %v640 = vpack.c.bf16 %v625, %v624
      %v641 = vpack.c.bf16 %v627, %v626
      %v642 = vpack.c.bf16 %v629, %v628
      %v643 = vpack.c.bf16 %v631, %v630
      %v644 = vpack.c.bf16 %v633, %v632
      %v645 = vpack.c.bf16 %v635, %v634
      %v646 = vpack.c.bf16 %v637, %v636
      %v647 = vpack.c.bf16 %v639, %v638
      %v648 = vld [vmem:[%s4] sm:$0xf]
      %v649 = vld [vmem:[%s4 + $0x4] sm:$0xf]
      %v650 = vld [vmem:[%s4 + $0x8] sm:$0xf]
      %v651 = vld [vmem:[%s4 + $0xc] sm:$0xf]
      %v652 = vld [vmem:[%s4 + $0x10] sm:$0xf]
      %v653 = vld [vmem:[%s4 + $0x14] sm:$0xf]
      %v654 = vld [vmem:[%s4 + $0x18] sm:$0xf]
      %v655 = vld [vmem:[%s4 + $0x1c] sm:$0xf]
      %v656 = vld [vmem:[%s4 + $0x20] sm:$0xf]
      %v657 = vld [vmem:[%s4 + $0x24] sm:$0xf]
      %v658 = vld [vmem:[%s4 + $0x28] sm:$0xf]
      %v659 = vld [vmem:[%s4 + $0x2c] sm:$0xf]
      %v660 = vld [vmem:[%s4 + $0x30] sm:$0xf]
      %v661 = vld [vmem:[%s4 + $0x34] sm:$0xf]
      %v662 = vld [vmem:[%s4 + $0x38] sm:$0xf]
      %v663 = vld [vmem:[%s4 + $0x3c] sm:$0xf]
      %v664 = vld [vmem:[%s5] sm:$0x1]
      %v665 = vld [vmem:[%s385] sm:$0x1]
      %v666 = vld [vmem:[%s385 + $0x1] sm:$0x1]
      %v667 = vld [vmem:[%s385 + $0x2] sm:$0x1]
      %v668 = vld [vmem:[%s385 + $0x3] sm:$0x1]
      %v669 = vld [vmem:[%s385 + $0x4] sm:$0x1]
      %v670 = vld [vmem:[%s385 + $0x5] sm:$0x1]
      %v671 = vld [vmem:[%s385 + $0x6] sm:$0x1]
      %v672 = vld [vmem:[%s385 + $0x7] sm:$0x1]
      %v673 = vld [vmem:[%s385 + $0x8] sm:$0x1]
      %v674 = vld [vmem:[%s385 + $0x9] sm:$0x1]
      %v675 = vld [vmem:[%s385 + $0xa] sm:$0x1]
      %v676 = vld [vmem:[%s385 + $0xb] sm:$0x1]
      %v677 = vld [vmem:[%s385 + $0xc] sm:$0x1]
      %v678 = vld [vmem:[%s385 + $0xd] sm:$0x1]
      %v679 = vld [vmem:[%s385 + $0xe] sm:$0x1]
      %v680 = vld [vmem:[%s385 + $0xf] sm:$0x1]
      %v682 = vlaneseq
      %v683 = vshrl.u32 %v682, 7
      %v684 = vsub.s32 0, %v683
      %v685 = vrot.slane %v664, %v684
      %v703 = vunpack.c.l.b16 %v648
      %v704 = vunpack.c.l.b16 %v649
      %v705 = vunpack.c.l.b16 %v650
      %v706 = vunpack.c.l.b16 %v651
      %v707 = vunpack.c.l.b16 %v652
      %v708 = vunpack.c.l.b16 %v653
      %v709 = vunpack.c.l.b16 %v654
      %v710 = vunpack.c.l.b16 %v655
      %v711 = vunpack.c.l.b16 %v656
      %v712 = vunpack.c.l.b16 %v657
      %v713 = vunpack.c.l.b16 %v658
      %v714 = vunpack.c.l.b16 %v659
      %v715 = vunpack.c.l.b16 %v660
      %v716 = vunpack.c.l.b16 %v661
      %v717 = vunpack.c.l.b16 %v662
      %v718 = vunpack.c.l.b16 %v663
      %v719 = vpack.c.b16 %v704, %v703
      %v720 = vpack.c.b16 %v706, %v705
      %v721 = vpack.c.b16 %v708, %v707
      %v722 = vpack.c.b16 %v710, %v709
      %v723 = vpack.c.b16 %v712, %v711
      %v724 = vpack.c.b16 %v714, %v713
      %v725 = vpack.c.b16 %v716, %v715
      %v726 = vpack.c.b16 %v718, %v717
      %735 = vmatprep.subr.bf16.mxu0 0
      %736 = vmatpush1.bf16.msra.mxu0 %v726
      %737 = vmatprep.subr.bf16.mxu0 0
      %738 = vmatpush1.bf16.msra.mxu0 %v725
      %739 = vmatprep.subr.bf16.mxu0 0
      %740 = vmatpush1.bf16.msra.mxu0 %v724
      %741 = vmatprep.subr.bf16.mxu0 0
      %742 = vmatpush1.bf16.msra.mxu0 %v723
      %743 = vmatprep.subr.bf16.mxu0 0
      %744 = vmatpush1.bf16.msra.mxu0 %v722
      %745 = vmatprep.subr.bf16.mxu0 0
      %746 = vmatpush1.bf16.msra.mxu0 %v721
      %747 = vmatprep.subr.bf16.mxu0 0
      %748 = vmatpush1.bf16.msra.mxu0 %v720
      %749 = vmatprep.subr.bf16.mxu0 0
      %750 = vmatpush1.bf16.msra.mxu0 %v719
      %751 = vmatprep.subr.bf16.mxu0 0
      %752 = vmatpush2.bf16.msra.mxu0 0
      %753 = vmatprep.subr.bf16.mxu0 0
      %754 = vmatpush2.bf16.msra.mxu0 0
      %755 = vmatprep.subr.bf16.mxu0 0
      %756 = vmatpush2.bf16.msra.mxu0 0
      %757 = vmatprep.subr.bf16.mxu0 0
      %758 = vmatpush2.bf16.msra.mxu0 0
      %759 = vmatprep.subr.bf16.mxu0 0
      %760 = vmatpush2.bf16.msra.mxu0 0
      %761 = vmatprep.subr.bf16.mxu0 0
      %762 = vmatpush2.bf16.msra.mxu0 0
      %763 = vmatprep.subr.bf16.mxu0 0
      %764 = vmatpush2.bf16.msra.mxu0 0
      %765 = vmatprep.subr.bf16.mxu0 0
      %766 = vmatpush2.bf16.msra.mxu0 0
      %767 = vmatprep.mubr.bf16.mxu0 0
      %768 = vmatmul.mubr.bf16.gmra.mxu0 %v640
      %v769 = vpop.f32.mrf.mxu0
      %v770 = vadd.f32 %v685, %v769
      %v771 = vpop.f32.mrf.mxu0
      %v772 = vpop.f32.mrf.mxu0
      %v773 = vadd.f32 %v685, %v772
      %v774 = vpop.f32.mrf.mxu0
      %775 = vmatprep.mubr.bf16.mxu0 0
      %776 = vmatmul.mubr.bf16.gmra.mxu0 %v641
      %v777 = vpop.f32.mrf.mxu0
      %v778 = vadd.f32 %v685, %v777
      %v779 = vpop.f32.mrf.mxu0
      %v780 = vpop.f32.mrf.mxu0
      %v781 = vadd.f32 %v685, %v780
      %v782 = vpop.f32.mrf.mxu0
      %783 = vmatprep.mubr.bf16.mxu0 0
      %784 = vmatmul.mubr.bf16.gmra.mxu0 %v642
      %v785 = vpop.f32.mrf.mxu0
      %v786 = vadd.f32 %v685, %v785
      %v787 = vpop.f32.mrf.mxu0
      %v788 = vpop.f32.mrf.mxu0
      %v789 = vadd.f32 %v685, %v788
      %v790 = vpop.f32.mrf.mxu0
      %791 = vmatprep.mubr.bf16.mxu0 0
      %792 = vmatmul.mubr.bf16.gmra.mxu0 %v643
      %v793 = vpop.f32.mrf.mxu0
      %v794 = vadd.f32 %v685, %v793
      %v795 = vpop.f32.mrf.mxu0
      %v796 = vpop.f32.mrf.mxu0
      %v797 = vadd.f32 %v685, %v796
      %v798 = vpop.f32.mrf.mxu0
      %799 = vmatprep.mubr.bf16.mxu0 0
      %800 = vmatmul.mubr.bf16.gmra.mxu0 %v644
      %v801 = vpop.f32.mrf.mxu0
      %v802 = vadd.f32 %v685, %v801
      %v803 = vpop.f32.mrf.mxu0
      %v804 = vpop.f32.mrf.mxu0
      %v805 = vadd.f32 %v685, %v804
      %v806 = vpop.f32.mrf.mxu0
      %807 = vmatprep.mubr.bf16.mxu0 0
      %808 = vmatmul.mubr.bf16.gmra.mxu0 %v645
      %v809 = vpop.f32.mrf.mxu0
      %v810 = vadd.f32 %v685, %v809
      %v811 = vpop.f32.mrf.mxu0
      %v812 = vpop.f32.mrf.mxu0
      %v813 = vadd.f32 %v685, %v812
      %v814 = vpop.f32.mrf.mxu0
      %815 = vmatprep.mubr.bf16.mxu0 0
      %816 = vmatmul.mubr.bf16.gmra.mxu0 %v646
      %v817 = vpop.f32.mrf.mxu0
      %v818 = vadd.f32 %v685, %v817
      %v819 = vpop.f32.mrf.mxu0
      %v820 = vpop.f32.mrf.mxu0
      %v821 = vadd.f32 %v685, %v820
      %v822 = vpop.f32.mrf.mxu0
      %823 = vmatprep.mubr.bf16.mxu0 0
      %824 = vmatmul.mubr.bf16.gmra.mxu0 %v647
      %v825 = vpop.f32.mrf.mxu0
      %v826 = vadd.f32 %v685, %v825
      %v827 = vpop.f32.mrf.mxu0
      %v828 = vpop.f32.mrf.mxu0
      %v829 = vadd.f32 %v685, %v828
      %v830 = vpop.f32.mrf.mxu0
      %831 = vdwg.mxu0
      %v832 = vunpack.c.l.bf16 %v665
      %v833 = vunpack.c.l.bf16 %v666
      %v834 = vunpack.c.l.bf16 %v667
      %v835 = vunpack.c.l.bf16 %v668
      %v836 = vunpack.c.l.bf16 %v669
      %v837 = vunpack.c.l.bf16 %v670
      %v838 = vunpack.c.l.bf16 %v671
      %v839 = vunpack.c.l.bf16 %v672
      %v840 = vunpack.c.l.bf16 %v673
      %v841 = vunpack.c.l.bf16 %v674
      %v842 = vunpack.c.l.bf16 %v675
      %v843 = vunpack.c.l.bf16 %v676
      %v844 = vunpack.c.l.bf16 %v677
      %v845 = vunpack.c.l.bf16 %v678
      %v846 = vunpack.c.l.bf16 %v679
      %v847 = vunpack.c.l.bf16 %v680
      %v848 = vlaneseq
      %v849 = vshrl.u32 %v848, 7
      %v850 = vsub.s32 0, %v849
      %v851 = vrot.slane %v832, %v850
      %v852 = vlaneseq
      %v853 = vshrl.u32 %v852, 7
      %v854 = vsub.s32 0, %v853
      %v855 = vrot.slane %v833, %v854
      %v856 = vlaneseq
      %v857 = vshrl.u32 %v856, 7
      %v858 = vsub.s32 0, %v857
      %v859 = vrot.slane %v834, %v858
      %v860 = vlaneseq
      %v861 = vshrl.u32 %v860, 7
      %v862 = vsub.s32 0, %v861
      %v863 = vrot.slane %v835, %v862
      %v864 = vlaneseq
      %v865 = vshrl.u32 %v864, 7
      %v866 = vsub.s32 0, %v865
      %v867 = vrot.slane %v836, %v866
      %v868 = vlaneseq
      %v869 = vshrl.u32 %v868, 7
      %v870 = vsub.s32 0, %v869
      %v871 = vrot.slane %v837, %v870
      %v872 = vlaneseq
      %v873 = vshrl.u32 %v872, 7
      %v874 = vsub.s32 0, %v873
      %v875 = vrot.slane %v838, %v874
      %v876 = vlaneseq
      %v877 = vshrl.u32 %v876, 7
      %v878 = vsub.s32 0, %v877
      %v879 = vrot.slane %v839, %v878
      %v880 = vlaneseq
      %v881 = vshrl.u32 %v880, 7
      %v882 = vsub.s32 0, %v881
      %v883 = vrot.slane %v840, %v882
      %v884 = vlaneseq
      %v885 = vshrl.u32 %v884, 7
      %v886 = vsub.s32 0, %v885
      %v887 = vrot.slane %v841, %v886
      %v888 = vlaneseq
      %v889 = vshrl.u32 %v888, 7
      %v890 = vsub.s32 0, %v889
      %v891 = vrot.slane %v842, %v890
      %v892 = vlaneseq
      %v893 = vshrl.u32 %v892, 7
      %v894 = vsub.s32 0, %v893
      %v895 = vrot.slane %v843, %v894
      %v896 = vlaneseq
      %v897 = vshrl.u32 %v896, 7
      %v898 = vsub.s32 0, %v897
      %v899 = vrot.slane %v844, %v898
      %v900 = vlaneseq
      %v901 = vshrl.u32 %v900, 7
      %v902 = vsub.s32 0, %v901
      %v903 = vrot.slane %v845, %v902
      %v904 = vlaneseq
      %v905 = vshrl.u32 %v904, 7
      %v906 = vsub.s32 0, %v905
      %v907 = vrot.slane %v846, %v906
      %v908 = vlaneseq
      %v909 = vshrl.u32 %v908, 7
      %v910 = vsub.s32 0, %v909
      %v911 = vrot.slane %v847, %v910
      %v912 = vmul.f32 %v851, %v770
      %v913 = vmul.f32 %v855, %v773
      %v914 = vmul.f32 %v859, %v778
      %v915 = vmul.f32 %v863, %v781
      %v916 = vmul.f32 %v867, %v786
      %v917 = vmul.f32 %v871, %v789
      %v918 = vmul.f32 %v875, %v794
      %v919 = vmul.f32 %v879, %v797
      %v920 = vmul.f32 %v883, %v802
      %v921 = vmul.f32 %v887, %v805
      %v922 = vmul.f32 %v891, %v810
      %v923 = vmul.f32 %v895, %v813
      %v924 = vmul.f32 %v899, %v818
      %v925 = vmul.f32 %v903, %v821
      %v926 = vmul.f32 %v907, %v826
      %v927 = vmul.f32 %v911, %v829
      %v928 = vmax.f32 %v912, 0.0
      %v929 = vmax.f32 %v913, 0.0
      %v930 = vmax.f32 %v914, 0.0
      %v931 = vmax.f32 %v915, 0.0
      %v932 = vmax.f32 %v916, 0.0
      %v933 = vmax.f32 %v917, 0.0
      %v934 = vmax.f32 %v918, 0.0
      %v935 = vmax.f32 %v919, 0.0
      %v936 = vmax.f32 %v920, 0.0
      %v937 = vmax.f32 %v921, 0.0
      %v938 = vmax.f32 %v922, 0.0
      %v939 = vmax.f32 %v923, 0.0
      %v940 = vmax.f32 %v924, 0.0
      %v941 = vmax.f32 %v925, 0.0
      %v942 = vmax.f32 %v926, 0.0
      %v943 = vmax.f32 %v927, 0.0
      %v944 = vpack.c.bf16 %v929, %v928
      %v945 = vpack.c.bf16 %v931, %v930
      %v946 = vpack.c.bf16 %v933, %v932
      %v947 = vpack.c.bf16 %v935, %v934
      %v948 = vpack.c.bf16 %v937, %v936
      %v949 = vpack.c.bf16 %v939, %v938
      %v950 = vpack.c.bf16 %v941, %v940
      %v951 = vpack.c.bf16 %v943, %v942
      %v952 = vld [vmem:[%s7] sm:$0xf]
      %v953 = vld [vmem:[%s7 + $0x4] sm:$0xf]
      %v954 = vld [vmem:[%s7 + $0x8] sm:$0xf]
      %v955 = vld [vmem:[%s7 + $0xc] sm:$0xf]
      %v956 = vld [vmem:[%s7 + $0x10] sm:$0xf]
      %v957 = vld [vmem:[%s7 + $0x14] sm:$0xf]
      %v958 = vld [vmem:[%s7 + $0x18] sm:$0xf]
      %v959 = vld [vmem:[%s7 + $0x1c] sm:$0xf]
      %v960 = vld [vmem:[%s7 + $0x20] sm:$0xf]
      %v961 = vld [vmem:[%s7 + $0x24] sm:$0xf]
      %v962 = vld [vmem:[%s7 + $0x28] sm:$0xf]
      %v963 = vld [vmem:[%s7 + $0x2c] sm:$0xf]
      %v964 = vld [vmem:[%s7 + $0x30] sm:$0xf]
      %v965 = vld [vmem:[%s7 + $0x34] sm:$0xf]
      %v966 = vld [vmem:[%s7 + $0x38] sm:$0xf]
      %v967 = vld [vmem:[%s7 + $0x3c] sm:$0xf]
      %v968 = vld [vmem:[%s8] sm:$0x1]
      %v969 = vld [vmem:[%s390] sm:$0x1]
      %v970 = vld [vmem:[%s390 + $0x1] sm:$0x1]
      %v971 = vld [vmem:[%s390 + $0x2] sm:$0x1]
      %v972 = vld [vmem:[%s390 + $0x3] sm:$0x1]
      %v973 = vld [vmem:[%s390 + $0x4] sm:$0x1]
      %v974 = vld [vmem:[%s390 + $0x5] sm:$0x1]
      %v975 = vld [vmem:[%s390 + $0x6] sm:$0x1]
      %v976 = vld [vmem:[%s390 + $0x7] sm:$0x1]
      %v977 = vld [vmem:[%s390 + $0x8] sm:$0x1]
      %v978 = vld [vmem:[%s390 + $0x9] sm:$0x1]
      %v979 = vld [vmem:[%s390 + $0xa] sm:$0x1]
      %v980 = vld [vmem:[%s390 + $0xb] sm:$0x1]
      %v981 = vld [vmem:[%s390 + $0xc] sm:$0x1]
      %v982 = vld [vmem:[%s390 + $0xd] sm:$0x1]
      %v983 = vld [vmem:[%s390 + $0xe] sm:$0x1]
      %v984 = vld [vmem:[%s390 + $0xf] sm:$0x1]
      %v986 = vlaneseq
      %v987 = vshrl.u32 %v986, 7
      %v988 = vsub.s32 0, %v987
      %v989 = vrot.slane %v968, %v988
      %v1007 = vunpack.c.l.b16 %v952
      %v1008 = vunpack.c.l.b16 %v953
      %v1009 = vunpack.c.l.b16 %v954
      %v1010 = vunpack.c.l.b16 %v955
      %v1011 = vunpack.c.l.b16 %v956
      %v1012 = vunpack.c.l.b16 %v957
      %v1013 = vunpack.c.l.b16 %v958
      %v1014 = vunpack.c.l.b16 %v959
      %v1015 = vunpack.c.l.b16 %v960
      %v1016 = vunpack.c.l.b16 %v961
      %v1017 = vunpack.c.l.b16 %v962
      %v1018 = vunpack.c.l.b16 %v963
      %v1019 = vunpack.c.l.b16 %v964
      %v1020 = vunpack.c.l.b16 %v965
      %v1021 = vunpack.c.l.b16 %v966
      %v1022 = vunpack.c.l.b16 %v967
      %v1023 = vpack.c.b16 %v1008, %v1007
      %v1024 = vpack.c.b16 %v1010, %v1009
      %v1025 = vpack.c.b16 %v1012, %v1011
      %v1026 = vpack.c.b16 %v1014, %v1013
      %v1027 = vpack.c.b16 %v1016, %v1015
      %v1028 = vpack.c.b16 %v1018, %v1017
      %v1029 = vpack.c.b16 %v1020, %v1019
      %v1030 = vpack.c.b16 %v1022, %v1021
      %1039 = vmatprep.subr.bf16.mxu0 0
      %1040 = vmatpush1.bf16.msra.mxu0 %v1030
      %1041 = vmatprep.subr.bf16.mxu0 0
      %1042 = vmatpush1.bf16.msra.mxu0 %v1029
      %1043 = vmatprep.subr.bf16.mxu0 0
      %1044 = vmatpush1.bf16.msra.mxu0 %v1028
      %1045 = vmatprep.subr.bf16.mxu0 0
      %1046 = vmatpush1.bf16.msra.mxu0 %v1027
      %1047 = vmatprep.subr.bf16.mxu0 0
      %1048 = vmatpush1.bf16.msra.mxu0 %v1026
      %1049 = vmatprep.subr.bf16.mxu0 0
      %1050 = vmatpush1.bf16.msra.mxu0 %v1025
      %1051 = vmatprep.subr.bf16.mxu0 0
      %1052 = vmatpush1.bf16.msra.mxu0 %v1024
      %1053 = vmatprep.subr.bf16.mxu0 0
      %1054 = vmatpush1.bf16.msra.mxu0 %v1023
      %1055 = vmatprep.subr.bf16.mxu0 0
      %1056 = vmatpush2.bf16.msra.mxu0 0
      %1057 = vmatprep.subr.bf16.mxu0 0
      %1058 = vmatpush2.bf16.msra.mxu0 0
      %1059 = vmatprep.subr.bf16.mxu0 0
      %1060 = vmatpush2.bf16.msra.mxu0 0
      %1061 = vmatprep.subr.bf16.mxu0 0
      %1062 = vmatpush2.bf16.msra.mxu0 0
      %1063 = vmatprep.subr.bf16.mxu0 0
      %1064 = vmatpush2.bf16.msra.mxu0 0
      %1065 = vmatprep.subr.bf16.mxu0 0
      %1066 = vmatpush2.bf16.msra.mxu0 0
      %1067 = vmatprep.subr.bf16.mxu0 0
      %1068 = vmatpush2.bf16.msra.mxu0 0
      %1069 = vmatprep.subr.bf16.mxu0 0
      %1070 = vmatpush2.bf16.msra.mxu0 0
      %1071 = vmatprep.mubr.bf16.mxu0 0
      %1072 = vmatmul.mubr.bf16.gmra.mxu0 %v944
      %v1073 = vpop.f32.mrf.mxu0
      %v1074 = vadd.f32 %v989, %v1073
      %v1075 = vpop.f32.mrf.mxu0
      %v1076 = vpop.f32.mrf.mxu0
      %v1077 = vadd.f32 %v989, %v1076
      %v1078 = vpop.f32.mrf.mxu0
      %1079 = vmatprep.mubr.bf16.mxu0 0
      %1080 = vmatmul.mubr.bf16.gmra.mxu0 %v945
      %v1081 = vpop.f32.mrf.mxu0
      %v1082 = vadd.f32 %v989, %v1081
      %v1083 = vpop.f32.mrf.mxu0
      %v1084 = vpop.f32.mrf.mxu0
      %v1085 = vadd.f32 %v989, %v1084
      %v1086 = vpop.f32.mrf.mxu0
      %1087 = vmatprep.mubr.bf16.mxu0 0
      %1088 = vmatmul.mubr.bf16.gmra.mxu0 %v946
      %v1089 = vpop.f32.mrf.mxu0
      %v1090 = vadd.f32 %v989, %v1089
      %v1091 = vpop.f32.mrf.mxu0
      %v1092 = vpop.f32.mrf.mxu0
      %v1093 = vadd.f32 %v989, %v1092
      %v1094 = vpop.f32.mrf.mxu0
      %1095 = vmatprep.mubr.bf16.mxu0 0
      %1096 = vmatmul.mubr.bf16.gmra.mxu0 %v947
      %v1097 = vpop.f32.mrf.mxu0
      %v1098 = vadd.f32 %v989, %v1097
      %v1099 = vpop.f32.mrf.mxu0
      %v1100 = vpop.f32.mrf.mxu0
      %v1101 = vadd.f32 %v989, %v1100
      %v1102 = vpop.f32.mrf.mxu0
      %1103 = vmatprep.mubr.bf16.mxu0 0
      %1104 = vmatmul.mubr.bf16.gmra.mxu0 %v948
      %v1105 = vpop.f32.mrf.mxu0
      %v1106 = vadd.f32 %v989, %v1105
      %v1107 = vpop.f32.mrf.mxu0
      %v1108 = vpop.f32.mrf.mxu0
      %v1109 = vadd.f32 %v989, %v1108
      %v1110 = vpop.f32.mrf.mxu0
      %1111 = vmatprep.mubr.bf16.mxu0 0
      %1112 = vmatmul.mubr.bf16.gmra.mxu0 %v949
      %v1113 = vpop.f32.mrf.mxu0
      %v1114 = vadd.f32 %v989, %v1113
      %v1115 = vpop.f32.mrf.mxu0
      %v1116 = vpop.f32.mrf.mxu0
      %v1117 = vadd.f32 %v989, %v1116
      %v1118 = vpop.f32.mrf.mxu0
      %1119 = vmatprep.mubr.bf16.mxu0 0
      %1120 = vmatmul.mubr.bf16.gmra.mxu0 %v950
      %v1121 = vpop.f32.mrf.mxu0
      %v1122 = vadd.f32 %v989, %v1121
      %v1123 = vpop.f32.mrf.mxu0
      %v1124 = vpop.f32.mrf.mxu0
      %v1125 = vadd.f32 %v989, %v1124
      %v1126 = vpop.f32.mrf.mxu0
      %1127 = vmatprep.mubr.bf16.mxu0 0
      %1128 = vmatmul.mubr.bf16.gmra.mxu0 %v951
      %v1129 = vpop.f32.mrf.mxu0
      %v1130 = vadd.f32 %v989, %v1129
      %v1131 = vpop.f32.mrf.mxu0
      %v1132 = vpop.f32.mrf.mxu0
      %v1133 = vadd.f32 %v989, %v1132
      %v1134 = vpop.f32.mrf.mxu0
      %1135 = vdwg.mxu0
      %v1136 = vunpack.c.l.bf16 %v969
      %v1137 = vunpack.c.l.bf16 %v970
      %v1138 = vunpack.c.l.bf16 %v971
      %v1139 = vunpack.c.l.bf16 %v972
      %v1140 = vunpack.c.l.bf16 %v973
      %v1141 = vunpack.c.l.bf16 %v974
      %v1142 = vunpack.c.l.bf16 %v975
      %v1143 = vunpack.c.l.bf16 %v976
      %v1144 = vunpack.c.l.bf16 %v977
      %v1145 = vunpack.c.l.bf16 %v978
      %v1146 = vunpack.c.l.bf16 %v979
      %v1147 = vunpack.c.l.bf16 %v980
      %v1148 = vunpack.c.l.bf16 %v981
      %v1149 = vunpack.c.l.bf16 %v982
      %v1150 = vunpack.c.l.bf16 %v983
      %v1151 = vunpack.c.l.bf16 %v984
      %v1152 = vlaneseq
      %v1153 = vshrl.u32 %v1152, 7
      %v1154 = vsub.s32 0, %v1153
      %v1155 = vrot.slane %v1136, %v1154
      %v1156 = vlaneseq
      %v1157 = vshrl.u32 %v1156, 7
      %v1158 = vsub.s32 0, %v1157
      %v1159 = vrot.slane %v1137, %v1158
      %v1160 = vlaneseq
      %v1161 = vshrl.u32 %v1160, 7
      %v1162 = vsub.s32 0, %v1161
      %v1163 = vrot.slane %v1138, %v1162
      %v1164 = vlaneseq
      %v1165 = vshrl.u32 %v1164, 7
      %v1166 = vsub.s32 0, %v1165
      %v1167 = vrot.slane %v1139, %v1166
      %v1168 = vlaneseq
      %v1169 = vshrl.u32 %v1168, 7
      %v1170 = vsub.s32 0, %v1169
      %v1171 = vrot.slane %v1140, %v1170
      %v1172 = vlaneseq
      %v1173 = vshrl.u32 %v1172, 7
      %v1174 = vsub.s32 0, %v1173
      %v1175 = vrot.slane %v1141, %v1174
      %v1176 = vlaneseq
      %v1177 = vshrl.u32 %v1176, 7
      %v1178 = vsub.s32 0, %v1177
      %v1179 = vrot.slane %v1142, %v1178
      %v1180 = vlaneseq
      %v1181 = vshrl.u32 %v1180, 7
      %v1182 = vsub.s32 0, %v1181
      %v1183 = vrot.slane %v1143, %v1182
      %v1184 = vlaneseq
      %v1185 = vshrl.u32 %v1184, 7
      %v1186 = vsub.s32 0, %v1185
      %v1187 = vrot.slane %v1144, %v1186
      %v1188 = vlaneseq
      %v1189 = vshrl.u32 %v1188, 7
      %v1190 = vsub.s32 0, %v1189
      %v1191 = vrot.slane %v1145, %v1190
      %v1192 = vlaneseq
      %v1193 = vshrl.u32 %v1192, 7
      %v1194 = vsub.s32 0, %v1193
      %v1195 = vrot.slane %v1146, %v1194
      %v1196 = vlaneseq
      %v1197 = vshrl.u32 %v1196, 7
      %v1198 = vsub.s32 0, %v1197
      %v1199 = vrot.slane %v1147, %v1198
      %v1200 = vlaneseq
      %v1201 = vshrl.u32 %v1200, 7
      %v1202 = vsub.s32 0, %v1201
      %v1203 = vrot.slane %v1148, %v1202
      %v1204 = vlaneseq
      %v1205 = vshrl.u32 %v1204, 7
      %v1206 = vsub.s32 0, %v1205
      %v1207 = vrot.slane %v1149, %v1206
      %v1208 = vlaneseq
      %v1209 = vshrl.u32 %v1208, 7
      %v1210 = vsub.s32 0, %v1209
      %v1211 = vrot.slane %v1150, %v1210
      %v1212 = vlaneseq
      %v1213 = vshrl.u32 %v1212, 7
      %v1214 = vsub.s32 0, %v1213
      %v1215 = vrot.slane %v1151, %v1214
      %v1216 = vmul.f32 %v1155, %v1074
      %v1217 = vmul.f32 %v1159, %v1077
      %v1218 = vmul.f32 %v1163, %v1082
      %v1219 = vmul.f32 %v1167, %v1085
      %v1220 = vmul.f32 %v1171, %v1090
      %v1221 = vmul.f32 %v1175, %v1093
      %v1222 = vmul.f32 %v1179, %v1098
      %v1223 = vmul.f32 %v1183, %v1101
      %v1224 = vmul.f32 %v1187, %v1106
      %v1225 = vmul.f32 %v1191, %v1109
      %v1226 = vmul.f32 %v1195, %v1114
      %v1227 = vmul.f32 %v1199, %v1117
      %v1228 = vmul.f32 %v1203, %v1122
      %v1229 = vmul.f32 %v1207, %v1125
      %v1230 = vmul.f32 %v1211, %v1130
      %v1231 = vmul.f32 %v1215, %v1133
      %vm1232 = vcmask 31744
      %1233 = vst.msk [vmem:[%s396] sm:$0xff] %vm1232, %v1216
      %1234 = vst.msk [vmem:[%s396 + $0x8] sm:$0xff] %vm1232, %v1217
      %1235 = vst.msk [vmem:[%s396 + $0x10] sm:$0xff] %vm1232, %v1218
      %1236 = vst.msk [vmem:[%s396 + $0x18] sm:$0xff] %vm1232, %v1219
      %1237 = vst.msk [vmem:[%s396 + $0x20] sm:$0xff] %vm1232, %v1220
      %1238 = vst.msk [vmem:[%s396 + $0x28] sm:$0xff] %vm1232, %v1221
      %1239 = vst.msk [vmem:[%s396 + $0x30] sm:$0xff] %vm1232, %v1222
      %1240 = vst.msk [vmem:[%s396 + $0x38] sm:$0xff] %vm1232, %v1223
      %1241 = vst.msk [vmem:[%s396 + $0x40] sm:$0xff] %vm1232, %v1224
      %1242 = vst.msk [vmem:[%s396 + $0x48] sm:$0xff] %vm1232, %v1225
      %1243 = vst.msk [vmem:[%s396 + $0x50] sm:$0xff] %vm1232, %v1226
      %1244 = vst.msk [vmem:[%s396 + $0x58] sm:$0xff] %vm1232, %v1227
      %1245 = vst.msk [vmem:[%s396 + $0x60] sm:$0xff] %vm1232, %v1228
      %1246 = vst.msk [vmem:[%s396 + $0x68] sm:$0xff] %vm1232, %v1229
      %1247 = vst.msk [vmem:[%s396 + $0x70] sm:$0xff] %vm1232, %v1230
      %1248 = vst.msk [vmem:[%s396 + $0x78] sm:$0xff] %vm1232, %v1231
      %s1249 = smul.u32 16, %s21
      %p1250 = scmp.lt.s32.totalorder %s1249, 127
      %s1251 = scalar_select %p1250, %s1249, 127
      %s1252 = smul.addr %s1251, 8
      %s1253 = scalar_lea.vmem %s10, %s1252
      // Predicated region
      $region61: #{tpu_custom_call.1} parent=59 // pred_check
        %p1254 = pneg %p264
      $region62: #{tpu_custom_call.1} parent=59 // pred_check_branch
        %1256 = sbr.rel (%p1254) target = $region64
      $region63: #{tpu_custom_call.1} parent=59 // pred_region
        %s1257 = smul.u32 16, %s21
      $region64: #{tpu_custom_call.1} parent=59 // pred_fallthru
        _
    $region60: #{tpu_custom_call.1} parent=5 // pred_fallthru
      _
    %p1258 = scmp.le.s32.totalorder 2, %s16
    // Predicated region
    $region65: #{tpu_custom_call.1} parent=5 // pred_check
      %p1259 = pneg %p1258
    $region66: #{tpu_custom_call.1} parent=5 // pred_check_branch
      %1261 = sbr.rel (%p1259) target = $region68
    $region67: #{tpu_custom_call.1} parent=5 // pred_region
      %s1262 = ssub.s32 %s16, 2
      // Predicated region
      $region69: #{tpu_custom_call.1} parent=67 // pred_check
        %p1263 = pneg %p270
      $region70: #{tpu_custom_call.1} parent=67 // pred_check_branch
        %1265 = sbr.rel (%p1263) target = $region72
      $region71: #{tpu_custom_call.1} parent=67 // pred_region
        %s1266 = smul.u32 16, %s22
        %p1267 = scmp.lt.s32.totalorder %s1266, 127
        %s1268 = scalar_select %p1267, %s1266, 127
        %s1269 = smul.addr %s1268, 8
        %s1270 = scalar_lea.vmem %s10, %s1269
      $region72: #{tpu_custom_call.1} parent=67 // pred_fallthru
        _
    $region68: #{tpu_custom_call.1} parent=5 // pred_fallthru
      _
  $region6: #{tpu_custom_call.1} parent=0 // loop_footer
    %s20 = sadd.s32 1, %s16
  $region7: #{tpu_custom_call.1} parent=0 // loop_footer_branch
    %15 = sbr.rel target = $region3
  $region8: #{tpu_custom_call.1} parent=0 // loop_exit
    _

</llo_original>
